<compile_context>
chip_gen: v7x
topology: tpu7x:2x2x1
jax: 0.10.0
libtpu: 0.0.40
codegen_flags: <defaults>
</compile_context>

<pallas_src>
import functools

import jax
import jax.numpy as jnp
from jax.experimental import pallas as pl
from jax.experimental.pallas import tpu as pltpu


def _round_up(x, m):
    return (x + m - 1) // m * m


def _vmem_capacity_bytes():
    """Physical VMEM of the local TPU generation (fallback: 64 MiB)."""
    try:
        info = pltpu.get_tpu_info()
        cap = getattr(info, "vmem_capacity_bytes", None)
        if cap:
            return int(cap)
    except Exception:
        pass
    return 64 * 1024 * 1024


def _conv_bn_relu_kernel(x_ref, w_ref, bias_ref, o_ref, col_ref, *,
                         kh_size, kw_size, dilation, tile_h, out_w, cin,
                         k_col, k_pad):
    """One (batch, row-tile, cout-tile) step: im2col + single matmul + epilogue.

    x_ref:    (1, Hp, Wp, Cin)   padded NHWC image, compute dtype (VMEM)
    w_ref:    (K_pad, TCo)       BN-scale-folded weights, zero K padding (VMEM)
    bias_ref: (1, TCo)           folded conv bias + BN bias, f32 (VMEM)
    o_ref:    (1, TH*W, TCo)     lane-dense output tile (VMEM)
    col_ref:  (TH*W, K_pad)      im2col scratch, persists across grid steps
    """
    t = pl.program_id(1)
    j = pl.program_id(2)
    row0 = pl.multiple_of(t * tile_h, tile_h)

    # Build the im2col slab only for the first Cout tile of this row tile; the
    # Cout axis is the innermost "arbitrary" grid axis (never split across
    # cores, iterated in order), so the scratch is valid for j = 1..CJ-1.
    @pl.when(j == 0)
    def _build_im2col():
        if k_pad > k_col:
            # Padded K columns must be zero: the padded weight rows are zero
            # too, but uninitialized VMEM could hold NaN/Inf (NaN * 0 = NaN).
            col_ref[:, k_col:] = jnp.zeros(
                (tile_h * out_w, k_pad - k_col), col_ref.dtype)
        for kh in range(kh_size):
            for kw in range(kw_size):
                tap = kh * kw_size + kw
                patch = x_ref[0,
                              pl.ds(row0 + kh * dilation, tile_h),
                              kw * dilation:kw * dilation + out_w,
                              :]                                  # (TH, W, Cin)
                col_ref[:, tap * cin:(tap + 1) * cin] = patch.reshape(
                    tile_h * out_w, cin)
        # TODO(synk): for Cin < 128 the per-tap stores above are masked
        # (Cin-wide); a roll-based unfold writing KW*Cin-wide slabs per kh and
        # overlapping the im2col build with the matmul would cut the non-MXU
        # phase further.

    # Single MXU contraction over all KH*KW*Cin taps, f32 accumulate.
    acc = jnp.dot(col_ref[...], w_ref[...],
                  preferred_element_type=jnp.float32)             # (TH*W, TCo)
    y = jnp.maximum(acc + bias_ref[...], 0.0)
    o_ref[0] = y.astype(o_ref.dtype)


def standard_conv(x_nchw, weight, conv_bias, bn_gamma, bn_beta, bn_mean,
                  bn_var, *, dilation=1, eps=1e-5,
                  compute_dtype=jnp.float32, out_dtype=jnp.float32,
                  cout_tile=None):
    """StandardConv forward (stride=1, padding='same', groups=1).

    x_nchw:    (N, Cin, H, W)      float32
    weight:    (Cout, Cin, KH, KW) float32 (PyTorch Conv2d layout)
    conv_bias: (Cout,)
    bn_*:      (Cout,)             BatchNorm2d inference-mode params/stats
    Returns (N, Cout, H, W) in out_dtype.
    """
    N, Cin, H, W = x_nchw.shape
    Cout, Cin_w, KH, KW = weight.shape
    assert Cin_w == Cin, "groups != 1 is not supported"

    # 'same' padding (stride=1): total = dilation*(k-1); extra element goes on
    # the high side for even kernels (matches PyTorch and XLA SAME).
    pad_h = dilation * (KH - 1)
    pad_w = dilation * (KW - 1)
    ph0, ph1 = pad_h // 2, pad_h - pad_h // 2
    pw0, pw1 = pad_w // 2, pad_w - pad_w // 2

    # NCHW -> NHWC + zero pad (one wrapper HBM pass).
    # TODO(synk): keep the model NHWC end-to-end / fill halos in-kernel to
    # drop this pass and the final NHWC->NCHW transpose when the surrounding
    # graph allows it.
    x_nhwc = jnp.transpose(x_nchw, (0, 2, 3, 1))
    x_pad = jnp.pad(x_nhwc, ((0, 0), (ph0, ph1), (pw0, pw1), (0, 0)))
    x_pad = x_pad.astype(compute_dtype)
    Hp, Wp = x_pad.shape[1], x_pad.shape[2]

    # Fold inference-mode BN: per-channel scale into the weights (exact
    # algebraic fold); only a per-channel bias remains for the epilogue.
    inv_std = 1.0 / jnp.sqrt(bn_var.astype(jnp.float32) + eps)
    scale = bn_gamma.astype(jnp.float32) * inv_std                   # (Cout,)
    bias = (bn_beta.astype(jnp.float32)
            + (conv_bias.astype(jnp.float32)
               - bn_mean.astype(jnp.float32)) * scale)              # (Cout,)

    cap = _vmem_capacity_bytes()

    # Cout tiling: lane-dense (multiple of 128). 256 matches the v6e/v7x MXU
    # width and bounds per-step VMEM on v7x; 512 is fine when VMEM is
    # plentiful (v5e/v6e 128 MiB).
    Cout_128 = _round_up(Cout, 128)
    if cout_tile is None:
        cout_tile = 512 if cap >= 96 * 1024 * 1024 else 256
    TCo = min(_round_up(cout_tile, 128), Cout_128)
    Cout_pad = _round_up(Cout_128, TCo)
    CJ = Cout_pad // TCo

    # Contraction dim K, padded to a lane multiple; padded weight rows = 0.
    K_col = KH * KW * Cin
    K_pad = _round_up(K_col, 128)
    w = jnp.transpose(weight, (2, 3, 1, 0)).reshape(K_col, Cout)
    w = w * scale[None, :]
    w = jnp.pad(w, ((0, K_pad - K_col), (0, Cout_pad - Cout)))
    w = w.astype(compute_dtype)
    bias_p = jnp.pad(bias, (0, Cout_pad - Cout)).reshape(1, Cout_pad)
    bias_p = bias_p.astype(jnp.float32)

    # Row-tile height TH: M = TH*W is the matmul M dim. Budget the im2col
    # slab and keep M a multiple of 8 (sublane-aligned tiles).
    itemsize = jnp.dtype(compute_dtype).itemsize
    col_budget = 8 * 1024 * 1024
    max_m = max(W, min(4096, col_budget // max(1, K_pad * itemsize)))
    TH = H
    for cand in range(H, 0, -1):
        if H % cand:
            continue
        m = cand * W
        if cand != H and m % 8:
            continue
        if m <= max_m:
            TH = cand
            break
    # Prefer >=2 row tiles (feeds v7x's 2nd TensorCore at small batch) as long
    # as M stays MXU-friendly (>=256).
    if H // TH < 2:
        for cand in range(TH - 1, 0, -1):
            if H % cand == 0 and (cand * W) % 8 == 0 and cand * W >= 256:
                TH = cand
                break
    T = H // TH
    M = TH * W
    # TODO(synk): non-divisible H could use a masked tail tile instead of
    # falling back to a larger TH.

    kernel = functools.partial(
        _conv_bn_relu_kernel, kh_size=KH, kw_size=KW, dilation=dilation,
        tile_h=TH, out_w=W, cin=Cin, k_col=K_col, k_pad=K_pad)

    # Single-buffer the grid-(mostly-)invariant operands: the image only
    # changes on the outer batch axis, weights/bias never change when CJ == 1
    # (keep double-buffering for the weights when they change per Cout tile).
    def _spec(shape, index_map, single_buffer):
        if single_buffer:
            return pl.BlockSpec(shape, index_map,
                                pipeline_mode=pl.Buffered(1))
        return pl.BlockSpec(shape, index_map)

    # TODO(synk): for very large feature maps replace the whole-image x block
    # with halo'd row blocks (manual DMA) so resident x is O(TH + halo) rows,
    # and pack W*Cin into the lane dim when Cin < 128 to avoid lane padding.
    x_spec = _spec((1, Hp, Wp, Cin), lambda n, t, j: (n, 0, 0, 0), True)
    w_spec = _spec((K_pad, TCo), lambda n, t, j: (0, j), CJ == 1)
    b_spec = _spec((1, TCo), lambda n, t, j: (0, j), CJ == 1)
    o_spec = pl.BlockSpec((1, M, TCo), lambda n, t, j: (n, t, j))

    # Generation-aware VMEM budget: derived from the actual resident blocks,
    # clamped below physical capacity (64 MiB v7x / 128 MiB v5e, v6e).
    x_bytes = Hp * _round_up(Wp, 8) * _round_up(Cin, 128) * itemsize
    w_bytes = _round_up(K_pad, 8) * TCo * itemsize * (1 if CJ == 1 else 2)
    b_bytes = 8 * TCo * 4 * (1 if CJ == 1 else 2)
    o_bytes = _round_up(M, 8) * TCo * jnp.dtype(out_dtype).itemsize * 2
    col_bytes = _round_up(M, 8) * K_pad * itemsize
    needed = x_bytes + w_bytes + b_bytes + o_bytes + col_bytes
    cap_limit = min(int(cap * 0.85), 100 * 1024 * 1024)
    vmem_limit = min(cap_limit, max(2 * needed, 32 * 1024 * 1024))

    out_flat = pl.pallas_call(
        kernel,
        out_shape=jax.ShapeDtypeStruct((N, H * W, Cout_pad), out_dtype),
        grid_spec=pltpu.PrefetchScalarGridSpec(
            num_scalar_prefetch=0,
            grid=(N, T, CJ),
            in_specs=[x_spec, w_spec, b_spec],
            out_specs=o_spec,
            scratch_shapes=[pltpu.VMEM((M, K_pad), compute_dtype)],
        ),
        compiler_params=pltpu.CompilerParams(
            dimension_semantics=("parallel", "parallel", "arbitrary"),
            vmem_limit_bytes=vmem_limit,
        ),
    )(x_pad, w, bias_p)

    # (N, H*W, Cout_pad) -> (N, Cout, H, W).
    # TODO(synk): skip the transpose (and the Cout_pad/Cout write
    # amplification for very small Cout) when the consumer accepts NHWC.
    out = out_flat.reshape(N, H, W, Cout_pad)[..., :Cout]
    return jnp.transpose(out, (0, 3, 1, 2))


def _reference(x_nchw, weight, conv_bias, bn_gamma, bn_beta, bn_mean, bn_var,
               *, dilation=1, eps=1e-5):
    """Pure-JAX reference (lax.conv) for sanity checking."""
    y = jax.lax.conv_general_dilated(
        x_nchw, weight, window_strides=(1, 1), padding="SAME",
        rhs_dilation=(dilation, dilation),
        dimension_numbers=("NCHW", "OIHW", "NCHW"))
    y = y + conv_bias.reshape(1, -1, 1, 1)
    inv_std = 1.0 / jnp.sqrt(bn_var + eps)
    y = (y - bn_mean.reshape(1, -1, 1, 1)) * (
        bn_gamma * inv_std).reshape(1, -1, 1, 1)
    y = y + bn_beta.reshape(1, -1, 1, 1)
    return jnp.maximum(y, 0.0)


if __name__ == "__main__":
    key = jax.random.PRNGKey(0)

    # ---- Case 1: N=2, Cin=4, Cout=8, 16x16, k=3, f32 ------------------------
    N, Cin, Cout, H, W, K = 2, 4, 8, 16, 16, 3
    ks = jax.random.split(key, 8)
    x = jax.random.normal(ks[0], (N, Cin, H, W), dtype=jnp.float32)
    weight = jax.random.normal(ks[1], (Cout, Cin, K, K), dtype=jnp.float32) * 0.1
    conv_bias = jax.random.normal(ks[2], (Cout,), dtype=jnp.float32) * 0.1
    bn_gamma = 1.0 + 0.2 * jax.random.normal(ks[3], (Cout,), dtype=jnp.float32)
    bn_beta = 0.1 * jax.random.normal(ks[4], (Cout,), dtype=jnp.float32)
    bn_mean = 0.1 * jax.random.normal(ks[5], (Cout,), dtype=jnp.float32)
    bn_var = 0.5 + jax.random.uniform(ks[6], (Cout,), dtype=jnp.float32)

    ref = _reference(x, weight, conv_bias, bn_gamma, bn_beta, bn_mean, bn_var)
    out = standard_conv(x, weight, conv_bias, bn_gamma, bn_beta, bn_mean,
                        bn_var)
    out = jax.block_until_ready(out)
    assert out.shape == (N, Cout, H, W)
    assert jnp.allclose(out, ref, atol=1e-4, rtol=1e-4), float(
        jnp.max(jnp.abs(out - ref)))

    # ---- Case 2: bf16 compute + bf16 output (MXU bf16 path) -----------------
    out_bf16 = standard_conv(x, weight, conv_bias, bn_gamma, bn_beta, bn_mean,
                             bn_var, compute_dtype=jnp.bfloat16,
                             out_dtype=jnp.bfloat16)
    out_bf16 = jax.block_until_ready(out_bf16)
    assert out_bf16.dtype == jnp.bfloat16
    assert jnp.allclose(out_bf16.astype(jnp.float32), ref, atol=1e-1,
                        rtol=1e-1)

    # ---- Case 3: dilation=2 + multiple Cout tiles (CJ > 1 path) -------------
    N2, Cin2, Cout2, H2, W2, K2 = 1, 8, 160, 8, 8, 3
    ks2 = jax.random.split(ks[7], 7)
    x2 = jax.random.normal(ks2[0], (N2, Cin2, H2, W2), dtype=jnp.float32)
    w2 = jax.random.normal(ks2[1], (Cout2, Cin2, K2, K2),
                           dtype=jnp.float32) * 0.1
    b2 = jax.random.normal(ks2[2], (Cout2,), dtype=jnp.float32) * 0.1
    g2 = 1.0 + 0.2 * jax.random.normal(ks2[3], (Cout2,), dtype=jnp.float32)
    be2 = 0.1 * jax.random.normal(ks2[4], (Cout2,), dtype=jnp.float32)
    m2 = 0.1 * jax.random.normal(ks2[5], (Cout2,), dtype=jnp.float32)
    v2 = 0.5 + jax.random.uniform(ks2[6], (Cout2,), dtype=jnp.float32)

    ref2 = _reference(x2, w2, b2, g2, be2, m2, v2, dilation=2)
    out2 = standard_conv(x2, w2, b2, g2, be2, m2, v2, dilation=2,
                         cout_tile=128)
    out2 = jax.block_until_ready(out2)
    assert out2.shape == (N2, Cout2, H2, W2)
    assert jnp.allclose(out2, ref2, atol=1e-4, rtol=1e-4), float(
        jnp.max(jnp.abs(out2 - ref2)))

    print("KERNEL_OK")
</pallas_src>

<mosaic_0001>
module attributes {stable_mosaic.version = 11 : i64} {
  func.func @_conv_bn_relu_kernel(%arg0: i32, %arg1: i32, %arg2: i32, %arg3: memref<1x18x18x4xf32, #tpu.memory_space<vmem>>, %arg4: memref<128x128xf32, #tpu.memory_space<vmem>>, %arg5: memref<1x128xf32, #tpu.memory_space<vmem>>, %arg6: memref<1x256x128xf32, #tpu.memory_space<vmem>>, %arg7: memref<256x128xf32, #tpu.memory_space<vmem>>) attributes {dimension_semantics = [#tpu.dimension_semantics<parallel>, #tpu.dimension_semantics<parallel>, #tpu.dimension_semantics<arbitrary>], iteration_bounds = array<i64: 2, 1, 1>, scalar_prefetch = 0 : i64, scratch_operands = 1 : i64, tpu.core_type = #tpu.core_type<tc>, window_params = [{pipeline_mode = #tpu.pipeline_mode<synchronous>, transform_indices = @transform_0, window_bounds = array<i64: 1, 18, 18, 4>}, {pipeline_mode = #tpu.pipeline_mode<synchronous>, transform_indices = @transform_1, window_bounds = array<i64: 128, 128>}, {pipeline_mode = #tpu.pipeline_mode<synchronous>, transform_indices = @transform_2, window_bounds = array<i64: 1, 128>}, {transform_indices = @transform_3, window_bounds = array<i64: 1, 256, 128>}]} {
    %c16_i32 = arith.constant 16 : i32
    %0 = arith.muli %arg1, %c16_i32 : i32
    %1 = tpu.assume_multiple %0, 16 : i32
    %c0_i32 = arith.constant 0 : i32
    %2 = arith.cmpi eq, %arg2, %c0_i32 : i32
    %3 = arith.extui %2 : i1 to i32
    %c0_i32_0 = arith.constant 0 : i32
    %4 = arith.cmpi ne, %3, %c0_i32_0 : i32
    scf.if %4 {
      %cst_10 = arith.constant 0.000000e+00 : f32
      %16 = vector.broadcast %cst_10 : f32 to vector<256x92xf32>
      %c0_11 = arith.constant 0 : index
      %c36 = arith.constant 36 : index
      %17 = vector.load %arg7[%c0_11, %c36] : memref<256x128xf32, #tpu.memory_space<vmem>>, vector<256x92xf32>
      tpu.vector_store %arg7[%c0_11, %c36], %16 {strides = array<i32>} : memref<256x128xf32, #tpu.memory_space<vmem>>, vector<256x92xf32>,
      %c0_i32_12 = arith.constant 0 : i32
      %18 = arith.addi %1, %c0_i32_12 : i32
      %c0_13 = arith.constant 0 : index
      %19 = arith.index_cast %18 : i32 to index
      %c0_14 = arith.constant 0 : index
      %c0_15 = arith.constant 0 : index
      %20 = vector.load %arg3[%c0_13, %19, %c0_14, %c0_15] : memref<1x18x18x4xf32, #tpu.memory_space<vmem>>, vector<1x16x16x4xf32>
      %21 = vector.shape_cast %20 : vector<1x16x16x4xf32> to vector<16x16x4xf32>
      %22 = vector.shape_cast %21 : vector<16x16x4xf32> to vector<256x4xf32>
      %c0_16 = arith.constant 0 : index
      %c0_17 = arith.constant 0 : index
      %23 = vector.load %arg7[%c0_16, %c0_17] : memref<256x128xf32, #tpu.memory_space<vmem>>, vector<256x4xf32>
      tpu.vector_store %arg7[%c0_16, %c0_17], %22 {strides = array<i32>} : memref<256x128xf32, #tpu.memory_space<vmem>>, vector<256x4xf32>,
      %c0_i32_18 = arith.constant 0 : i32
      %24 = arith.addi %1, %c0_i32_18 : i32
      %c0_19 = arith.constant 0 : index
      %25 = arith.index_cast %24 : i32 to index
      %c1 = arith.constant 1 : index
      %c0_20 = arith.constant 0 : index
      %26 = vector.load %arg3[%c0_19, %25, %c1, %c0_20] : memref<1x18x18x4xf32, #tpu.memory_space<vmem>>, vector<1x16x16x4xf32>
      %27 = vector.shape_cast %26 : vector<1x16x16x4xf32> to vector<16x16x4xf32>
      %28 = vector.shape_cast %27 : vector<16x16x4xf32> to vector<256x4xf32>
      %c0_21 = arith.constant 0 : index
      %c4 = arith.constant 4 : index
      %29 = vector.load %arg7[%c0_21, %c4] : memref<256x128xf32, #tpu.memory_space<vmem>>, vector<256x4xf32>
      tpu.vector_store %arg7[%c0_21, %c4], %28 {strides = array<i32>} : memref<256x128xf32, #tpu.memory_space<vmem>>, vector<256x4xf32>,
      %c0_i32_22 = arith.constant 0 : i32
      %30 = arith.addi %1, %c0_i32_22 : i32
      %c0_23 = arith.constant 0 : index
      %31 = arith.index_cast %30 : i32 to index
      %c2 = arith.constant 2 : index
      %c0_24 = arith.constant 0 : index
      %32 = vector.load %arg3[%c0_23, %31, %c2, %c0_24] : memref<1x18x18x4xf32, #tpu.memory_space<vmem>>, vector<1x16x16x4xf32>
      %33 = vector.shape_cast %32 : vector<1x16x16x4xf32> to vector<16x16x4xf32>
      %34 = vector.shape_cast %33 : vector<16x16x4xf32> to vector<256x4xf32>
      %c0_25 = arith.constant 0 : index
      %c8 = arith.constant 8 : index
      %35 = vector.load %arg7[%c0_25, %c8] : memref<256x128xf32, #tpu.memory_space<vmem>>, vector<256x4xf32>
      tpu.vector_store %arg7[%c0_25, %c8], %34 {strides = array<i32>} : memref<256x128xf32, #tpu.memory_space<vmem>>, vector<256x4xf32>,
      %c1_i32 = arith.constant 1 : i32
      %36 = arith.addi %1, %c1_i32 : i32
      %c0_26 = arith.constant 0 : index
      %37 = arith.index_cast %36 : i32 to index
      %c0_27 = arith.constant 0 : index
      %c0_28 = arith.constant 0 : index
      %38 = vector.load %arg3[%c0_26, %37, %c0_27, %c0_28] : memref<1x18x18x4xf32, #tpu.memory_space<vmem>>, vector<1x16x16x4xf32>
      %39 = vector.shape_cast %38 : vector<1x16x16x4xf32> to vector<16x16x4xf32>
      %40 = vector.shape_cast %39 : vector<16x16x4xf32> to vector<256x4xf32>
      %c0_29 = arith.constant 0 : index
      %c12 = arith.constant 12 : index
      %41 = vector.load %arg7[%c0_29, %c12] : memref<256x128xf32, #tpu.memory_space<vmem>>, vector<256x4xf32>
      tpu.vector_store %arg7[%c0_29, %c12], %40 {strides = array<i32>} : memref<256x128xf32, #tpu.memory_space<vmem>>, vector<256x4xf32>,
      %c1_i32_30 = arith.constant 1 : i32
      %42 = arith.addi %1, %c1_i32_30 : i32
      %c0_31 = arith.constant 0 : index
      %43 = arith.index_cast %42 : i32 to index
      %c1_32 = arith.constant 1 : index
      %c0_33 = arith.constant 0 : index
      %44 = vector.load %arg3[%c0_31, %43, %c1_32, %c0_33] : memref<1x18x18x4xf32, #tpu.memory_space<vmem>>, vector<1x16x16x4xf32>
      %45 = vector.shape_cast %44 : vector<1x16x16x4xf32> to vector<16x16x4xf32>
      %46 = vector.shape_cast %45 : vector<16x16x4xf32> to vector<256x4xf32>
      %c0_34 = arith.constant 0 : index
      %c16 = arith.constant 16 : index
      %47 = vector.load %arg7[%c0_34, %c16] : memref<256x128xf32, #tpu.memory_space<vmem>>, vector<256x4xf32>
      tpu.vector_store %arg7[%c0_34, %c16], %46 {strides = array<i32>} : memref<256x128xf32, #tpu.memory_space<vmem>>, vector<256x4xf32>,
      %c1_i32_35 = arith.constant 1 : i32
      %48 = arith.addi %1, %c1_i32_35 : i32
      %c0_36 = arith.constant 0 : index
      %49 = arith.index_cast %48 : i32 to index
      %c2_37 = arith.constant 2 : index
      %c0_38 = arith.constant 0 : index
      %50 = vector.load %arg3[%c0_36, %49, %c2_37, %c0_38] : memref<1x18x18x4xf32, #tpu.memory_space<vmem>>, vector<1x16x16x4xf32>
      %51 = vector.shape_cast %50 : vector<1x16x16x4xf32> to vector<16x16x4xf32>
      %52 = vector.shape_cast %51 : vector<16x16x4xf32> to vector<256x4xf32>
      %c0_39 = arith.constant 0 : index
      %c20 = arith.constant 20 : index
      %53 = vector.load %arg7[%c0_39, %c20] : memref<256x128xf32, #tpu.memory_space<vmem>>, vector<256x4xf32>
      tpu.vector_store %arg7[%c0_39, %c20], %52 {strides = array<i32>} : memref<256x128xf32, #tpu.memory_space<vmem>>, vector<256x4xf32>,
      %c2_i32 = arith.constant 2 : i32
      %54 = arith.addi %1, %c2_i32 : i32
      %c0_40 = arith.constant 0 : index
      %55 = arith.index_cast %54 : i32 to index
      %c0_41 = arith.constant 0 : index
      %c0_42 = arith.constant 0 : index
      %56 = vector.load %arg3[%c0_40, %55, %c0_41, %c0_42] : memref<1x18x18x4xf32, #tpu.memory_space<vmem>>, vector<1x16x16x4xf32>
      %57 = vector.shape_cast %56 : vector<1x16x16x4xf32> to vector<16x16x4xf32>
      %58 = vector.shape_cast %57 : vector<16x16x4xf32> to vector<256x4xf32>
      %c0_43 = arith.constant 0 : index
      %c24 = arith.constant 24 : index
      %59 = vector.load %arg7[%c0_43, %c24] : memref<256x128xf32, #tpu.memory_space<vmem>>, vector<256x4xf32>
      tpu.vector_store %arg7[%c0_43, %c24], %58 {strides = array<i32>} : memref<256x128xf32, #tpu.memory_space<vmem>>, vector<256x4xf32>,
      %c2_i32_44 = arith.constant 2 : i32
      %60 = arith.addi %1, %c2_i32_44 : i32
      %c0_45 = arith.constant 0 : index
      %61 = arith.index_cast %60 : i32 to index
      %c1_46 = arith.constant 1 : index
      %c0_47 = arith.constant 0 : index
      %62 = vector.load %arg3[%c0_45, %61, %c1_46, %c0_47] : memref<1x18x18x4xf32, #tpu.memory_space<vmem>>, vector<1x16x16x4xf32>
      %63 = vector.shape_cast %62 : vector<1x16x16x4xf32> to vector<16x16x4xf32>
      %64 = vector.shape_cast %63 : vector<16x16x4xf32> to vector<256x4xf32>
      %c0_48 = arith.constant 0 : index
      %c28 = arith.constant 28 : index
      %65 = vector.load %arg7[%c0_48, %c28] : memref<256x128xf32, #tpu.memory_space<vmem>>, vector<256x4xf32>
      tpu.vector_store %arg7[%c0_48, %c28], %64 {strides = array<i32>} : memref<256x128xf32, #tpu.memory_space<vmem>>, vector<256x4xf32>,
      %c2_i32_49 = arith.constant 2 : i32
      %66 = arith.addi %1, %c2_i32_49 : i32
      %c0_50 = arith.constant 0 : index
      %67 = arith.index_cast %66 : i32 to index
      %c2_51 = arith.constant 2 : index
      %c0_52 = arith.constant 0 : index
      %68 = vector.load %arg3[%c0_50, %67, %c2_51, %c0_52] : memref<1x18x18x4xf32, #tpu.memory_space<vmem>>, vector<1x16x16x4xf32>
      %69 = vector.shape_cast %68 : vector<1x16x16x4xf32> to vector<16x16x4xf32>
      %70 = vector.shape_cast %69 : vector<16x16x4xf32> to vector<256x4xf32>
      %c0_53 = arith.constant 0 : index
      %c32 = arith.constant 32 : index
      %71 = vector.load %arg7[%c0_53, %c32] : memref<256x128xf32, #tpu.memory_space<vmem>>, vector<256x4xf32>
      tpu.vector_store %arg7[%c0_53, %c32], %70 {strides = array<i32>} : memref<256x128xf32, #tpu.memory_space<vmem>>, vector<256x4xf32>,
    } else {
    }
    %c0 = arith.constant 0 : index
    %c0_1 = arith.constant 0 : index
    %5 = vector.load %arg7[%c0, %c0_1] : memref<256x128xf32, #tpu.memory_space<vmem>>, vector<256x128xf32>
    %c0_2 = arith.constant 0 : index
    %c0_3 = arith.constant 0 : index
    %6 = vector.load %arg4[%c0_2, %c0_3] : memref<128x128xf32, #tpu.memory_space<vmem>>, vector<128x128xf32>
    %cst = arith.constant dense<0.000000e+00> : vector<256x128xf32>
    %7 = tpu.matmul %5, %6, %cst {dimension_numbers = #tpu.dot_dimension_numbers<[1], [0], [0], [1], [0, 0, 1, 1], [], []>} : vector<256x128xf32>, vector<128x128xf32>, vector<256x128xf32> -> vector<256x128xf32>
    %c0_4 = arith.constant 0 : index
    %c0_5 = arith.constant 0 : index
    %8 = vector.load %arg5[%c0_4, %c0_5] : memref<1x128xf32, #tpu.memory_space<vmem>>, vector<1x128xf32>
    %9 = vector.broadcast %8 : vector<1x128xf32> to vector<256x128xf32>
    %10 = arith.addf %7, %9 : vector<256x128xf32>
    %cst_6 = arith.constant 0.000000e+00 : f32
    %11 = vector.broadcast %cst_6 : f32 to vector<256x128xf32>
    %12 = arith.maximumf %10, %11 : vector<256x128xf32>
    %c0_7 = arith.constant 0 : index
    %c0_8 = arith.constant 0 : index
    %c0_9 = arith.constant 0 : index
    %13 = vector.load %arg6[%c0_7, %c0_8, %c0_9] : memref<1x256x128xf32, #tpu.memory_space<vmem>>, vector<1x256x128xf32>
    %14 = vector.shape_cast %13 : vector<1x256x128xf32> to vector<256x128xf32>
    %15 = vector.shape_cast %12 : vector<256x128xf32> to vector<1x256x128xf32>
    tpu.vector_store %arg6[%c0_7, %c0_8, %c0_9], %15 {strides = array<i32>} : memref<1x256x128xf32, #tpu.memory_space<vmem>>, vector<1x256x128xf32>,
    return
  }
  func.func @transform_0(%arg0: i32, %arg1: i32, %arg2: i32) -> (i32, i32, i32, i32) {
    %c0_i32 = arith.constant 0 : i32
    %c0_i32_0 = arith.constant 0 : i32
    %c0_i32_1 = arith.constant 0 : i32
    %c0_i32_2 = arith.constant 0 : i32
    return %arg0, %c0_i32, %c0_i32_0, %c0_i32_1 : i32, i32, i32, i32
  }
  func.func @transform_1(%arg0: i32, %arg1: i32, %arg2: i32) -> (i32, i32) {
    %c0_i32 = arith.constant 0 : i32
    %c0_i32_0 = arith.constant 0 : i32
    return %c0_i32, %arg2 : i32, i32
  }
  func.func @transform_2(%arg0: i32, %arg1: i32, %arg2: i32) -> (i32, i32) {
    %c0_i32 = arith.constant 0 : i32
    %c0_i32_0 = arith.constant 0 : i32
    return %c0_i32, %arg2 : i32, i32
  }
  func.func @transform_3(%arg0: i32, %arg1: i32, %arg2: i32) -> (i32, i32, i32) {
    %c0_i32 = arith.constant 0 : i32
    return %arg0, %arg1, %arg2 : i32, i32, i32
  }
}

</mosaic_0001>

<llo_original>
// kernel: tpu_custom_call.1
$region0: #{tpu_custom_call.1}
  #allocation0 [shape = 'u32[]', space=smem, size = 0x4, offset = 0x4, fixed_abs, tag = 'smem constant byte address 0x4 - core index']
  #allocation1 [shape = 'u32[144,128]{1,0:T(1,128)}', space=vmem, size = 0x12000, scoped, tag = 'internal scratch']
  #allocation2 [shape = 'f32[256,128]{1,0:T(8,128)}', space=vmem, size = 0x20000, scoped, tag = 'scratch operand']
  %s0 = inlined_call_operand.vmem [shape: f32[2,18,18,4], index: 0, kind: input, shape index: {}]
  %s1 = inlined_call_operand.vmem [shape: f32[128,128], index: 1, kind: input, shape index: {}]
  %s2 = inlined_call_operand.vmem [shape: f32[1,128], index: 2, kind: input, shape index: {}]
  %s3 = inlined_call_operand.hbm [shape: f32[2,256,128], index: 3, kind: output, shape index: {}]
  %s4 = sld [smem:[#allocation0]]
  $region49: #{tpu_custom_call.1} parent=0
    _
  %s6 = ssub.s32 1, %s4
  %s7 = scalar_select 0, %s6, %s4
  $region1: #{tpu_custom_call.1} parent=0
    #allocation3 [shape = 'u8[262144]{0}', space=vmem, size = 0x40000, scoped, tag = 'output window, operand 0']
    #allocation4 [shape = 's32[2]{0}', space=sflag, size = 0x8, scoped, tag = 'scoped memory for tpu_custom_call.1']
    %8 = vsyncpa [#allocation4], 0
    %s9 = scalar_lea.sflag [#allocation4], 1
    %10 = vsyncpa %s9, 0
    loop: start=0, step=1, limit=4
    $region2: #{tpu_custom_call.1} parent=1 // loop_pre_header
      _
    $region3: #{tpu_custom_call.1} parent=1 // loop_header
      %s12 = sphi 0, %s16
      %p13 = scmp.ge.s32.totalorder %s12, 4
      %s19 = sphi 0, %s38
      %s20 = sphi 0, %s34
      %s21 = sphi 0, %s30
      %s22 = sphi 0, %s19
      %s23 = sphi 0, %s20
      %s24 = sphi 0, %s21
      %s25 = sphi 0, %s22
      %s26 = sphi 0, %s23
      %s27 = sphi 0, %s24
      %s41 = sphi 0, %s43
      %s44 = sphi 0, %s41
      %s45 = sphi 0, %s44
      %s61 = sphi 0, %s45
      %s67 = sphi 0, %s69
      %s70 = sphi 0, %s67
      %s71 = sphi 0, %s70
      %s87 = sphi 0, %s71
      %s93 = sphi 0, %s95
      %s96 = sphi 0, %s93
      %s97 = sphi 0, %s96
      %s113 = sphi 0, %s97
      %s123 = sphi 0, %s125
      %s126 = sphi 0, %s123
      %s127 = sphi 0, %s126
      %s143 = sphi 0, %s127
    $region4: #{tpu_custom_call.1} parent=1 // loop_header_branch
      %15 = sbr.rel (%p13) target = $region8
    $region5: #{tpu_custom_call.1} parent=1 // loop_body
      %s17 = ssub.s32 %s12, 1
      %s18 = ssub.s32 %s12, 2
      %s28 = sadd.s32 1, %s21
      %p29 = scmp.ge.s32.totalorder %s28, 1
      %s30 = scalar_select %p29, 0, %s28
      %s31 = sadd.s32 1, %s20
      %s32 = scalar_select %p29, %s31, %s20
      %p33 = scmp.ge.s32.totalorder %s32, 1
      %s34 = scalar_select %p33, 0, %s32
      %s35 = sadd.s32 1, %s19
      %s36 = scalar_select %p33, %s35, %s19
      %p37 = scmp.ge.s32.totalorder %s36, 2
      %s38 = scalar_select %p37, 0, %s36
      %s39 = ssub.s32 %s19, %s38
      %p40 = scmp.eq.s32.totalorder %s39, 0
      %s42 = sadd.s32 %s41, 1
      %s43 = scalar_select %p40, %s41, %s42
      %p46 = pneg %p40
      %p47 = scmp.eq.s32.totalorder %s12, 1
      %p48 = por %p46, %p47
      %p49 = scmp.ne.s32.totalorder %s41, %s44
      %p50 = scmp.eq.s32.totalorder %s12, 0
      %p51 = por %p49, %p50
      %p52 = scmp.ne.s32.totalorder %s41, %s44
      %p53 = scmp.eq.s32.totalorder %s17, 1
      %p54 = por %p52, %p53
      %p55 = scmp.ne.s32.totalorder %s44, %s45
      %p56 = scmp.eq.s32.totalorder %s17, 0
      %p57 = por %p55, %p56
      %p58 = scmp.ne.s32.totalorder %s44, %s45
      %p59 = scmp.eq.s32.totalorder %s18, 1
      %p60 = por %p58, %p59
      %p62 = scmp.ne.s32.totalorder %s45, %s61
      %p63 = scmp.eq.s32.totalorder %s18, 0
      %p64 = por %p62, %p63
      %s65 = ssub.s32 %s21, %s30
      %p66 = scmp.eq.s32.totalorder %s65, 0
      %s68 = sadd.s32 %s67, 1
      %s69 = scalar_select %p66, %s67, %s68
      %p72 = pneg %p66
      %p73 = scmp.eq.s32.totalorder %s12, 1
      %p74 = por %p72, %p73
      %p75 = scmp.ne.s32.totalorder %s67, %s70
      %p76 = scmp.eq.s32.totalorder %s12, 0
      %p77 = por %p75, %p76
      %p78 = scmp.ne.s32.totalorder %s67, %s70
      %p79 = scmp.eq.s32.totalorder %s17, 1
      %p80 = por %p78, %p79
      %p81 = scmp.ne.s32.totalorder %s70, %s71
      %p82 = scmp.eq.s32.totalorder %s17, 0
      %p83 = por %p81, %p82
      %p84 = scmp.ne.s32.totalorder %s70, %s71
      %p85 = scmp.eq.s32.totalorder %s18, 1
      %p86 = por %p84, %p85
      %p88 = scmp.ne.s32.totalorder %s71, %s87
      %p89 = scmp.eq.s32.totalorder %s18, 0
      %p90 = por %p88, %p89
      %s91 = ssub.s32 %s21, %s30
      %p92 = scmp.eq.s32.totalorder %s91, 0
      %s94 = sadd.s32 %s93, 1
      %s95 = scalar_select %p92, %s93, %s94
      %p98 = pneg %p92
      %p99 = scmp.eq.s32.totalorder %s12, 1
      %p100 = por %p98, %p99
      %p101 = scmp.ne.s32.totalorder %s93, %s96
      %p102 = scmp.eq.s32.totalorder %s12, 0
      %p103 = por %p101, %p102
      %p104 = scmp.ne.s32.totalorder %s93, %s96
      %p105 = scmp.eq.s32.totalorder %s17, 1
      %p106 = por %p104, %p105
      %p107 = scmp.ne.s32.totalorder %s96, %s97
      %p108 = scmp.eq.s32.totalorder %s17, 0
      %p109 = por %p107, %p108
      %p110 = scmp.ne.s32.totalorder %s96, %s97
      %p111 = scmp.eq.s32.totalorder %s18, 1
      %p112 = por %p110, %p111
      %p114 = scmp.ne.s32.totalorder %s97, %s113
      %p115 = scmp.eq.s32.totalorder %s18, 0
      %p116 = por %p114, %p115
      %s117 = ssub.s32 %s19, %s38
      %s118 = ssub.s32 %s20, %s34
      %s119 = sor.u32 %s117, %s118
      %s120 = ssub.s32 %s21, %s30
      %s121 = sor.u32 %s119, %s120
      %p122 = scmp.eq.s32.totalorder %s121, 0
      %s124 = sadd.s32 %s123, 1
      %s125 = scalar_select %p122, %s123, %s124
      %p128 = pneg %p122
      %p129 = scmp.eq.s32.totalorder %s12, 1
      %p130 = por %p128, %p129
      %p131 = scmp.ne.s32.totalorder %s123, %s126
      %p132 = scmp.eq.s32.totalorder %s12, 0
      %p133 = por %p131, %p132
      %p134 = scmp.ne.s32.totalorder %s123, %s126
      %p135 = scmp.eq.s32.totalorder %s17, 1
      %p136 = por %p134, %p135
      %p137 = scmp.ne.s32.totalorder %s126, %s127
      %p138 = scmp.eq.s32.totalorder %s17, 0
      %p139 = por %p137, %p138
      %p140 = scmp.ne.s32.totalorder %s126, %s127
      %p141 = scmp.eq.s32.totalorder %s18, 1
      %p142 = por %p140, %p141
      %p144 = scmp.ne.s32.totalorder %s127, %s143
      %p145 = scmp.eq.s32.totalorder %s18, 0
      %p146 = por %p144, %p145
      %p147 = scmp.le.s32.totalorder 1, %s12
      %p148 = scmp.lt.s32.totalorder %s12, 3
      %p149 = pnand %p147, %p148
      %p150 = pneg %p149
      // Predicated region
      $region9: #{tpu_custom_call.1} parent=5 // pred_check
        _
      $region10: #{tpu_custom_call.1} parent=5 // pred_check_branch
        %152 = sbr.rel (%p149) target = $region12
      $region11: #{tpu_custom_call.1} parent=5 // pred_region
        %s153 = ssub.s32 %s12, 1
        // Predicated region
        $region13: #{tpu_custom_call.1} parent=11 // pred_check
          %p154 = pneg %p57
        $region14: #{tpu_custom_call.1} parent=11 // pred_check_branch
          %156 = sbr.rel (%p154) target = $region16
        $region15: #{tpu_custom_call.1} parent=11 // pred_region
          %p157 = scmp.lt.s32.totalorder %s22, 1
          %s158 = scalar_select %p157, %s22, 1
          %s159 = smul.addr %s158, 54
          %s160 = smul.addr %s159, 8
          %s161 = scalar_lea.vmem %s0, %s160
        $region16: #{tpu_custom_call.1} parent=11 // pred_fallthru
          _
        // Predicated region
        $region17: #{tpu_custom_call.1} parent=11 // pred_check
          %p162 = pneg %p83
        $region18: #{tpu_custom_call.1} parent=11 // pred_check_branch
          %164 = sbr.rel (%p162) target = $region20
        $region19: #{tpu_custom_call.1} parent=11 // pred_region
          %p165 = scmp.lt.s32.totalorder %s24, 0
          %s166 = scalar_select %p165, %s24, 0
          %s167 = smul.addr %s166, 8
          %s168 = scalar_lea.vmem %s1, %s167
        $region20: #{tpu_custom_call.1} parent=11 // pred_fallthru
          _
        // Predicated region
        $region21: #{tpu_custom_call.1} parent=11 // pred_check
          %p169 = pneg %p109
        $region22: #{tpu_custom_call.1} parent=11 // pred_check_branch
          %171 = sbr.rel (%p169) target = $region24
        $region23: #{tpu_custom_call.1} parent=11 // pred_region
          %p172 = scmp.lt.s32.totalorder %s24, 0
          %s173 = scalar_select %p172, %s24, 0
          %s174 = scalar_lea.vmem %s2, %s173
        $region24: #{tpu_custom_call.1} parent=11 // pred_fallthru
          _
      $region12: #{tpu_custom_call.1} parent=5 // pred_fallthru
        _
      %p175 = scmp.lt.s32.totalorder %s12, 2
      // Predicated region
      $region25: #{tpu_custom_call.1} parent=5 // pred_check
        %p176 = pneg %p175
      $region26: #{tpu_custom_call.1} parent=5 // pred_check_branch
        %178 = sbr.rel (%p176) target = $region28
      $region27: #{tpu_custom_call.1} parent=5 // pred_region
        _
      $region28: #{tpu_custom_call.1} parent=5 // pred_fallthru
        _
      %p179 = scmp.le.s32.totalorder 1, %s12
      %p180 = scmp.lt.s32.totalorder %s12, 3
      %p181 = pnand %p179, %p180
      %p182 = pneg %p181
      // Predicated region
      $region29: #{tpu_custom_call.1} parent=5 // pred_check
        _
      $region30: #{tpu_custom_call.1} parent=5 // pred_check_branch
        %184 = sbr.rel (%p181) target = $region32
      $region31: #{tpu_custom_call.1} parent=5 // pred_region
        %s185 = ssub.s32 %s12, 1
        %p186 = scmp.lt.s32.totalorder %s22, 1
        %s187 = scalar_select %p186, %s22, 1
        %s188 = smul.addr %s187, 54
        %s189 = smul.addr %s188, 8
        %s190 = scalar_lea.vmem %s0, %s189
        %p191 = pneg %p57
        %p192 = pneg %p54
        %p193 = scmp.lt.s32.totalorder %s24, 0
        %s194 = scalar_select %p193, %s24, 0
        %s195 = smul.addr %s194, 8
        %s196 = scalar_lea.vmem %s1, %s195
        %p197 = pneg %p83
        %p198 = pneg %p80
        %p199 = scmp.lt.s32.totalorder %s24, 0
        %s200 = scalar_select %p199, %s24, 0
        %s201 = scalar_lea.vmem %s2, %s200
        %p202 = pneg %p109
        %p203 = pneg %p106
        %p204 = pneg %p139
        %p205 = pneg %p136
        %s206 = sand.u32 %s126, 1
        %s207 = scalar_lea.sflag [#allocation4], %s206
        %s208 = sand.u32 %s126, 1
        %s209 = smul.addr %s208, 256
        %s210 = scalar_lea.vmem [#allocation3], %s209
        %p211 = scmp.lt.s32.totalorder %s22, 1
        %s212 = scalar_select %p211, %s22, 1
        %s213 = smul.addr %s212, 54
        %s214 = smul.addr %s213, 8
        %s215 = scalar_lea.vmem %s0, %s214
        %p216 = scmp.lt.s32.totalorder %s24, 0
        %s217 = scalar_select %p216, %s24, 0
        %s218 = smul.addr %s217, 8
        %s219 = scalar_lea.vmem %s1, %s218
        %p220 = scmp.lt.s32.totalorder %s24, 0
        %s221 = scalar_select %p220, %s24, 0
        %s222 = scalar_lea.vmem %s2, %s221
        %s223 = smul.u32 32, %s23
        %s224 = smul.u32 %s23, 16
        %p225 = scmp.eq.s32.totalorder %s24, 0
        // Predicated region
        $region33: #{tpu_custom_call.1} parent=31 // pred_check
          %p226 = pneg %p225
        $region34: #{tpu_custom_call.1} parent=31 // pred_check_branch
          %228 = sbr.rel (%p226) target = $region36
        $region35: #{tpu_custom_call.1} parent=31 // pred_region
          %vm229 = vcmask 1047840
          %230 = vst.msk [vmem:[#allocation2] sm:$0xff] %vm229, 0.0
          %231 = vst.msk [vmem:[#allocation2 + $0x8] sm:$0xff] %vm229, 0.0
          %232 = vst.msk [vmem:[#allocation2 + $0x10] sm:$0xff] %vm229, 0.0
          %233 = vst.msk [vmem:[#allocation2 + $0x18] sm:$0xff] %vm229, 0.0
          %234 = vst.msk [vmem:[#allocation2 + $0x20] sm:$0xff] %vm229, 0.0
          %235 = vst.msk [vmem:[#allocation2 + $0x28] sm:$0xff] %vm229, 0.0
          %236 = vst.msk [vmem:[#allocation2 + $0x30] sm:$0xff] %vm229, 0.0
          %237 = vst.msk [vmem:[#allocation2 + $0x38] sm:$0xff] %vm229, 0.0
          %238 = vst.msk [vmem:[#allocation2 + $0x40] sm:$0xff] %vm229, 0.0
          %239 = vst.msk [vmem:[#allocation2 + $0x48] sm:$0xff] %vm229, 0.0
          %240 = vst.msk [vmem:[#allocation2 + $0x50] sm:$0xff] %vm229, 0.0
          %241 = vst.msk [vmem:[#allocation2 + $0x58] sm:$0xff] %vm229, 0.0
          %242 = vst.msk [vmem:[#allocation2 + $0x60] sm:$0xff] %vm229, 0.0
          %243 = vst.msk [vmem:[#allocation2 + $0x68] sm:$0xff] %vm229, 0.0
          %244 = vst.msk [vmem:[#allocation2 + $0x70] sm:$0xff] %vm229, 0.0
          %245 = vst.msk [vmem:[#allocation2 + $0x78] sm:$0xff] %vm229, 0.0
          %246 = vst.msk [vmem:[#allocation2 + $0x80] sm:$0xff] %vm229, 0.0
          %247 = vst.msk [vmem:[#allocation2 + $0x88] sm:$0xff] %vm229, 0.0
          %248 = vst.msk [vmem:[#allocation2 + $0x90] sm:$0xff] %vm229, 0.0
          %249 = vst.msk [vmem:[#allocation2 + $0x98] sm:$0xff] %vm229, 0.0
          %250 = vst.msk [vmem:[#allocation2 + $0xa0] sm:$0xff] %vm229, 0.0
          %251 = vst.msk [vmem:[#allocation2 + $0xa8] sm:$0xff] %vm229, 0.0
          %252 = vst.msk [vmem:[#allocation2 + $0xb0] sm:$0xff] %vm229, 0.0
          %253 = vst.msk [vmem:[#allocation2 + $0xb8] sm:$0xff] %vm229, 0.0
          %254 = vst.msk [vmem:[#allocation2 + $0xc0] sm:$0xff] %vm229, 0.0
          %255 = vst.msk [vmem:[#allocation2 + $0xc8] sm:$0xff] %vm229, 0.0
          %256 = vst.msk [vmem:[#allocation2 + $0xd0] sm:$0xff] %vm229, 0.0
          %257 = vst.msk [vmem:[#allocation2 + $0xd8] sm:$0xff] %vm229, 0.0
          %258 = vst.msk [vmem:[#allocation2 + $0xe0] sm:$0xff] %vm229, 0.0
          %259 = vst.msk [vmem:[#allocation2 + $0xe8] sm:$0xff] %vm229, 0.0
          %260 = vst.msk [vmem:[#allocation2 + $0xf0] sm:$0xff] %vm229, 0.0
          %261 = vst.msk [vmem:[#allocation2 + $0xf8] sm:$0xff] %vm229, 0.0
          %s262 = smul.u32 %s224, 24
          %s263 = scalar_lea.vmem %s215, %s262
          %v264 = vld [vmem:[%s263] sm:$0xff]
          %v265 = vld [vmem:[%s263 + $0x8] sm:$0xff]
          %v266 = vld [vmem:[%s263 + $0x18] sm:$0xff]
          %v267 = vld [vmem:[%s263 + $0x20] sm:$0xff]
          %v268 = vld [vmem:[%s263 + $0x30] sm:$0xff]
          %v269 = vld [vmem:[%s263 + $0x38] sm:$0xff]
          %v270 = vld [vmem:[%s263 + $0x48] sm:$0xff]
          %v271 = vld [vmem:[%s263 + $0x50] sm:$0xff]
          %v272 = vld [vmem:[%s263 + $0x60] sm:$0xff]
          %v273 = vld [vmem:[%s263 + $0x68] sm:$0xff]
          %v274 = vld [vmem:[%s263 + $0x78] sm:$0xff]
          %v275 = vld [vmem:[%s263 + $0x80] sm:$0xff]
          %v276 = vld [vmem:[%s263 + $0x90] sm:$0xff]
          %v277 = vld [vmem:[%s263 + $0x98] sm:$0xff]
          %v278 = vld [vmem:[%s263 + $0xa8] sm:$0xff]
          %v279 = vld [vmem:[%s263 + $0xb0] sm:$0xff]
          %v280 = vld [vmem:[%s263 + $0xc0] sm:$0xff]
          %v281 = vld [vmem:[%s263 + $0xc8] sm:$0xff]
          %v282 = vld [vmem:[%s263 + $0xd8] sm:$0xff]
          %v283 = vld [vmem:[%s263 + $0xe0] sm:$0xff]
          %v284 = vld [vmem:[%s263 + $0xf0] sm:$0xff]
          %v285 = vld [vmem:[%s263 + $0xf8] sm:$0xff]
          %v286 = vld [vmem:[%s263 + $0x108] sm:$0xff]
          %v287 = vld [vmem:[%s263 + $0x110] sm:$0xff]
          %v288 = vld [vmem:[%s263 + $0x120] sm:$0xff]
          %v289 = vld [vmem:[%s263 + $0x128] sm:$0xff]
          %v290 = vld [vmem:[%s263 + $0x138] sm:$0xff]
          %v291 = vld [vmem:[%s263 + $0x140] sm:$0xff]
          %v292 = vld [vmem:[%s263 + $0x150] sm:$0xff]
          %v293 = vld [vmem:[%s263 + $0x158] sm:$0xff]
          %v294 = vld [vmem:[%s263 + $0x168] sm:$0xff]
          %v295 = vld [vmem:[%s263 + $0x170] sm:$0xff]
          %vm296 = vcmask 31744
          %297 = vst.msk [vmem:[#allocation2] sm:$0xff] %vm296, %v264
          %298 = vst.msk [vmem:[#allocation2 + $0x8] sm:$0xff] %vm296, %v265
          %299 = vst.msk [vmem:[#allocation2 + $0x10] sm:$0xff] %vm296, %v266
          %300 = vst.msk [vmem:[#allocation2 + $0x18] sm:$0xff] %vm296, %v267
          %301 = vst.msk [vmem:[#allocation2 + $0x20] sm:$0xff] %vm296, %v268
          %302 = vst.msk [vmem:[#allocation2 + $0x28] sm:$0xff] %vm296, %v269
          %303 = vst.msk [vmem:[#allocation2 + $0x30] sm:$0xff] %vm296, %v270
          %304 = vst.msk [vmem:[#allocation2 + $0x38] sm:$0xff] %vm296, %v271
          %305 = vst.msk [vmem:[#allocation2 + $0x40] sm:$0xff] %vm296, %v272
          %306 = vst.msk [vmem:[#allocation2 + $0x48] sm:$0xff] %vm296, %v273
          %307 = vst.msk [vmem:[#allocation2 + $0x50] sm:$0xff] %vm296, %v274
          %308 = vst.msk [vmem:[#allocation2 + $0x58] sm:$0xff] %vm296, %v275
          %309 = vst.msk [vmem:[#allocation2 + $0x60] sm:$0xff] %vm296, %v276
          %310 = vst.msk [vmem:[#allocation2 + $0x68] sm:$0xff] %vm296, %v277
          %311 = vst.msk [vmem:[#allocation2 + $0x70] sm:$0xff] %vm296, %v278
          %312 = vst.msk [vmem:[#allocation2 + $0x78] sm:$0xff] %vm296, %v279
          %313 = vst.msk [vmem:[#allocation2 + $0x80] sm:$0xff] %vm296, %v280
          %314 = vst.msk [vmem:[#allocation2 + $0x88] sm:$0xff] %vm296, %v281
          %315 = vst.msk [vmem:[#allocation2 + $0x90] sm:$0xff] %vm296, %v282
          %316 = vst.msk [vmem:[#allocation2 + $0x98] sm:$0xff] %vm296, %v283
          %317 = vst.msk [vmem:[#allocation2 + $0xa0] sm:$0xff] %vm296, %v284
          %318 = vst.msk [vmem:[#allocation2 + $0xa8] sm:$0xff] %vm296, %v285
          %319 = vst.msk [vmem:[#allocation2 + $0xb0] sm:$0xff] %vm296, %v286
          %320 = vst.msk [vmem:[#allocation2 + $0xb8] sm:$0xff] %vm296, %v287
          %321 = vst.msk [vmem:[#allocation2 + $0xc0] sm:$0xff] %vm296, %v288
          %322 = vst.msk [vmem:[#allocation2 + $0xc8] sm:$0xff] %vm296, %v289
          %323 = vst.msk [vmem:[#allocation2 + $0xd0] sm:$0xff] %vm296, %v290
          %324 = vst.msk [vmem:[#allocation2 + $0xd8] sm:$0xff] %vm296, %v291
          %325 = vst.msk [vmem:[#allocation2 + $0xe0] sm:$0xff] %vm296, %v292
          %326 = vst.msk [vmem:[#allocation2 + $0xe8] sm:$0xff] %vm296, %v293
          %327 = vst.msk [vmem:[#allocation2 + $0xf0] sm:$0xff] %vm296, %v294
          %328 = vst.msk [vmem:[#allocation2 + $0xf8] sm:$0xff] %vm296, %v295
          %v329 = vld [vmem:[%s263 + $0x1] sm:$0xff]
          %v330 = vld [vmem:[%s263 + $0x9] sm:$0xff]
          %v331 = vld [vmem:[%s263 + $0x19] sm:$0xff]
          %v332 = vld [vmem:[%s263 + $0x21] sm:$0xff]
          %v333 = vld [vmem:[%s263 + $0x31] sm:$0xff]
          %v334 = vld [vmem:[%s263 + $0x39] sm:$0xff]
          %v335 = vld [vmem:[%s263 + $0x49] sm:$0xff]
          %v336 = vld [vmem:[%s263 + $0x51] sm:$0xff]
          %v337 = vld [vmem:[%s263 + $0x61] sm:$0xff]
          %v338 = vld [vmem:[%s263 + $0x69] sm:$0xff]
          %v339 = vld [vmem:[%s263 + $0x79] sm:$0xff]
          %v340 = vld [vmem:[%s263 + $0x81] sm:$0xff]
          %v341 = vld [vmem:[%s263 + $0x91] sm:$0xff]
          %v342 = vld [vmem:[%s263 + $0x99] sm:$0xff]
          %v343 = vld [vmem:[%s263 + $0xa9] sm:$0xff]
          %v344 = vld [vmem:[%s263 + $0xb1] sm:$0xff]
          %v345 = vld [vmem:[%s263 + $0xc1] sm:$0xff]
          %v346 = vld [vmem:[%s263 + $0xc9] sm:$0xff]
          %v347 = vld [vmem:[%s263 + $0xd9] sm:$0xff]
          %v348 = vld [vmem:[%s263 + $0xe1] sm:$0xff]
          %v349 = vld [vmem:[%s263 + $0xf1] sm:$0xff]
          %v350 = vld [vmem:[%s263 + $0xf9] sm:$0xff]
          %v351 = vld [vmem:[%s263 + $0x109] sm:$0xff]
          %v352 = vld [vmem:[%s263 + $0x111] sm:$0xff]
          %v353 = vld [vmem:[%s263 + $0x121] sm:$0xff]
          %v354 = vld [vmem:[%s263 + $0x129] sm:$0xff]
          %v355 = vld [vmem:[%s263 + $0x139] sm:$0xff]
          %v356 = vld [vmem:[%s263 + $0x141] sm:$0xff]
          %v357 = vld [vmem:[%s263 + $0x151] sm:$0xff]
          %v358 = vld [vmem:[%s263 + $0x159] sm:$0xff]
          %v359 = vld [vmem:[%s263 + $0x169] sm:$0xff]
          %v360 = vld [vmem:[%s263 + $0x171] sm:$0xff]
          %393 = vrot.lane.b32.xlu0 %v329, 4
          %v394 = vpop.permute.xlu0 %393
          %395 = vrot.lane.b32.xlu0 %v330, 4
          %v396 = vpop.permute.xlu0 %395
          %397 = vrot.lane.b32.xlu0 %v331, 4
          %v398 = vpop.permute.xlu0 %397
          %399 = vrot.lane.b32.xlu0 %v332, 4
          %v400 = vpop.permute.xlu0 %399
          %401 = vrot.lane.b32.xlu0 %v333, 4
          %v402 = vpop.permute.xlu0 %401
          %403 = vrot.lane.b32.xlu0 %v334, 4
          %v404 = vpop.permute.xlu0 %403
          %405 = vrot.lane.b32.xlu0 %v335, 4
          %v406 = vpop.permute.xlu0 %405
          %407 = vrot.lane.b32.xlu0 %v336, 4
          %v408 = vpop.permute.xlu0 %407
          %409 = vrot.lane.b32.xlu0 %v337, 4
          %v410 = vpop.permute.xlu0 %409
          %411 = vrot.lane.b32.xlu0 %v338, 4
          %v412 = vpop.permute.xlu0 %411
          %413 = vrot.lane.b32.xlu0 %v339, 4
          %v414 = vpop.permute.xlu0 %413
          %415 = vrot.lane.b32.xlu0 %v340, 4
          %v416 = vpop.permute.xlu0 %415
          %417 = vrot.lane.b32.xlu0 %v341, 4
          %v418 = vpop.permute.xlu0 %417
          %419 = vrot.lane.b32.xlu0 %v342, 4
          %v420 = vpop.permute.xlu0 %419
          %421 = vrot.lane.b32.xlu0 %v343, 4
          %v422 = vpop.permute.xlu0 %421
          %423 = vrot.lane.b32.xlu0 %v344, 4
          %v424 = vpop.permute.xlu0 %423
          %425 = vrot.lane.b32.xlu0 %v345, 4
          %v426 = vpop.permute.xlu0 %425
          %427 = vrot.lane.b32.xlu0 %v346, 4
          %v428 = vpop.permute.xlu0 %427
          %429 = vrot.lane.b32.xlu0 %v347, 4
          %v430 = vpop.permute.xlu0 %429
          %431 = vrot.lane.b32.xlu0 %v348, 4
          %v432 = vpop.permute.xlu0 %431
          %433 = vrot.lane.b32.xlu0 %v349, 4
          %v434 = vpop.permute.xlu0 %433
          %435 = vrot.lane.b32.xlu0 %v350, 4
          %v436 = vpop.permute.xlu0 %435
          %437 = vrot.lane.b32.xlu0 %v351, 4
          %v438 = vpop.permute.xlu0 %437
          %439 = vrot.lane.b32.xlu0 %v352, 4
          %v440 = vpop.permute.xlu0 %439
          %441 = vrot.lane.b32.xlu0 %v353, 4
          %v442 = vpop.permute.xlu0 %441
          %443 = vrot.lane.b32.xlu0 %v354, 4
          %v444 = vpop.permute.xlu0 %443
          %445 = vrot.lane.b32.xlu0 %v355, 4
          %v446 = vpop.permute.xlu0 %445
          %447 = vrot.lane.b32.xlu0 %v356, 4
          %v448 = vpop.permute.xlu0 %447
          %449 = vrot.lane.b32.xlu0 %v357, 4
          %v450 = vpop.permute.xlu0 %449
          %451 = vrot.lane.b32.xlu0 %v358, 4
          %v452 = vpop.permute.xlu0 %451
          %453 = vrot.lane.b32.xlu0 %v359, 4
          %v454 = vpop.permute.xlu0 %453
          %455 = vrot.lane.b32.xlu0 %v360, 4
          %v456 = vpop.permute.xlu0 %455
          %vm489 = vcmask 64544
          %490 = vst.msk [vmem:[#allocation2] sm:$0xff] %vm489, %v394
          %491 = vst.msk [vmem:[#allocation2 + $0x8] sm:$0xff] %vm489, %v396
          %492 = vst.msk [vmem:[#allocation2 + $0x10] sm:$0xff] %vm489, %v398
          %493 = vst.msk [vmem:[#allocation2 + $0x18] sm:$0xff] %vm489, %v400
          %494 = vst.msk [vmem:[#allocation2 + $0x20] sm:$0xff] %vm489, %v402
          %495 = vst.msk [vmem:[#allocation2 + $0x28] sm:$0xff] %vm489, %v404
          %496 = vst.msk [vmem:[#allocation2 + $0x30] sm:$0xff] %vm489, %v406
          %497 = vst.msk [vmem:[#allocation2 + $0x38] sm:$0xff] %vm489, %v408
          %498 = vst.msk [vmem:[#allocation2 + $0x40] sm:$0xff] %vm489, %v410
          %499 = vst.msk [vmem:[#allocation2 + $0x48] sm:$0xff] %vm489, %v412
          %500 = vst.msk [vmem:[#allocation2 + $0x50] sm:$0xff] %vm489, %v414
          %501 = vst.msk [vmem:[#allocation2 + $0x58] sm:$0xff] %vm489, %v416
          %502 = vst.msk [vmem:[#allocation2 + $0x60] sm:$0xff] %vm489, %v418
          %503 = vst.msk [vmem:[#allocation2 + $0x68] sm:$0xff] %vm489, %v420
          %504 = vst.msk [vmem:[#allocation2 + $0x70] sm:$0xff] %vm489, %v422
          %505 = vst.msk [vmem:[#allocation2 + $0x78] sm:$0xff] %vm489, %v424
          %506 = vst.msk [vmem:[#allocation2 + $0x80] sm:$0xff] %vm489, %v426
          %507 = vst.msk [vmem:[#allocation2 + $0x88] sm:$0xff] %vm489, %v428
          %508 = vst.msk [vmem:[#allocation2 + $0x90] sm:$0xff] %vm489, %v430
          %509 = vst.msk [vmem:[#allocation2 + $0x98] sm:$0xff] %vm489, %v432
          %510 = vst.msk [vmem:[#allocation2 + $0xa0] sm:$0xff] %vm489, %v434
          %511 = vst.msk [vmem:[#allocation2 + $0xa8] sm:$0xff] %vm489, %v436
          %512 = vst.msk [vmem:[#allocation2 + $0xb0] sm:$0xff] %vm489, %v438
          %513 = vst.msk [vmem:[#allocation2 + $0xb8] sm:$0xff] %vm489, %v440
          %514 = vst.msk [vmem:[#allocation2 + $0xc0] sm:$0xff] %vm489, %v442
          %515 = vst.msk [vmem:[#allocation2 + $0xc8] sm:$0xff] %vm489, %v444
          %516 = vst.msk [vmem:[#allocation2 + $0xd0] sm:$0xff] %vm489, %v446
          %517 = vst.msk [vmem:[#allocation2 + $0xd8] sm:$0xff] %vm489, %v448
          %518 = vst.msk [vmem:[#allocation2 + $0xe0] sm:$0xff] %vm489, %v450
          %519 = vst.msk [vmem:[#allocation2 + $0xe8] sm:$0xff] %vm489, %v452
          %520 = vst.msk [vmem:[#allocation2 + $0xf0] sm:$0xff] %vm489, %v454
          %521 = vst.msk [vmem:[#allocation2 + $0xf8] sm:$0xff] %vm489, %v456
          %v522 = vld [vmem:[%s263 + $0x2] sm:$0xff]
          %v523 = vld [vmem:[%s263 + $0xa] sm:$0xff]
          %v524 = vld [vmem:[%s263 + $0x1a] sm:$0xff]
          %v525 = vld [vmem:[%s263 + $0x22] sm:$0xff]
          %v526 = vld [vmem:[%s263 + $0x32] sm:$0xff]
          %v527 = vld [vmem:[%s263 + $0x3a] sm:$0xff]
          %v528 = vld [vmem:[%s263 + $0x4a] sm:$0xff]
          %v529 = vld [vmem:[%s263 + $0x52] sm:$0xff]
          %v530 = vld [vmem:[%s263 + $0x62] sm:$0xff]
          %v531 = vld [vmem:[%s263 + $0x6a] sm:$0xff]
          %v532 = vld [vmem:[%s263 + $0x7a] sm:$0xff]
          %v533 = vld [vmem:[%s263 + $0x82] sm:$0xff]
          %v534 = vld [vmem:[%s263 + $0x92] sm:$0xff]
          %v535 = vld [vmem:[%s263 + $0x9a] sm:$0xff]
          %v536 = vld [vmem:[%s263 + $0xaa] sm:$0xff]
          %v537 = vld [vmem:[%s263 + $0xb2] sm:$0xff]
          %v538 = vld [vmem:[%s263 + $0xc2] sm:$0xff]
          %v539 = vld [vmem:[%s263 + $0xca] sm:$0xff]
          %v540 = vld [vmem:[%s263 + $0xda] sm:$0xff]
          %v541 = vld [vmem:[%s263 + $0xe2] sm:$0xff]
          %v542 = vld [vmem:[%s263 + $0xf2] sm:$0xff]
          %v543 = vld [vmem:[%s263 + $0xfa] sm:$0xff]
          %v544 = vld [vmem:[%s263 + $0x10a] sm:$0xff]
          %v545 = vld [vmem:[%s263 + $0x112] sm:$0xff]
          %v546 = vld [vmem:[%s263 + $0x122] sm:$0xff]
          %v547 = vld [vmem:[%s263 + $0x12a] sm:$0xff]
          %v548 = vld [vmem:[%s263 + $0x13a] sm:$0xff]
          %v549 = vld [vmem:[%s263 + $0x142] sm:$0xff]
          %v550 = vld [vmem:[%s263 + $0x152] sm:$0xff]
          %v551 = vld [vmem:[%s263 + $0x15a] sm:$0xff]
          %v552 = vld [vmem:[%s263 + $0x16a] sm:$0xff]
          %v553 = vld [vmem:[%s263 + $0x172] sm:$0xff]
          %586 = vrot.lane.b32.xlu0 %v522, 8
          %v587 = vpop.permute.xlu0 %586
          %588 = vrot.lane.b32.xlu0 %v523, 8
          %v589 = vpop.permute.xlu0 %588
          %590 = vrot.lane.b32.xlu0 %v524, 8
          %v591 = vpop.permute.xlu0 %590
          %592 = vrot.lane.b32.xlu0 %v525, 8
          %v593 = vpop.permute.xlu0 %592
          %594 = vrot.lane.b32.xlu0 %v526, 8
          %v595 = vpop.permute.xlu0 %594
          %596 = vrot.lane.b32.xlu0 %v527, 8
          %v597 = vpop.permute.xlu0 %596
          %598 = vrot.lane.b32.xlu0 %v528, 8
          %v599 = vpop.permute.xlu0 %598
          %600 = vrot.lane.b32.xlu0 %v529, 8
          %v601 = vpop.permute.xlu0 %600
          %602 = vrot.lane.b32.xlu0 %v530, 8
          %v603 = vpop.permute.xlu0 %602
          %604 = vrot.lane.b32.xlu0 %v531, 8
          %v605 = vpop.permute.xlu0 %604
          %606 = vrot.lane.b32.xlu0 %v532, 8
          %v607 = vpop.permute.xlu0 %606
          %608 = vrot.lane.b32.xlu0 %v533, 8
          %v609 = vpop.permute.xlu0 %608
          %610 = vrot.lane.b32.xlu0 %v534, 8
          %v611 = vpop.permute.xlu0 %610
          %612 = vrot.lane.b32.xlu0 %v535, 8
          %v613 = vpop.permute.xlu0 %612
          %614 = vrot.lane.b32.xlu0 %v536, 8
          %v615 = vpop.permute.xlu0 %614
          %616 = vrot.lane.b32.xlu0 %v537, 8
          %v617 = vpop.permute.xlu0 %616
          %618 = vrot.lane.b32.xlu0 %v538, 8
          %v619 = vpop.permute.xlu0 %618
          %620 = vrot.lane.b32.xlu0 %v539, 8
          %v621 = vpop.permute.xlu0 %620
          %622 = vrot.lane.b32.xlu0 %v540, 8
          %v623 = vpop.permute.xlu0 %622
          %624 = vrot.lane.b32.xlu0 %v541, 8
          %v625 = vpop.permute.xlu0 %624
          %626 = vrot.lane.b32.xlu0 %v542, 8
          %v627 = vpop.permute.xlu0 %626
          %628 = vrot.lane.b32.xlu0 %v543, 8
          %v629 = vpop.permute.xlu0 %628
          %630 = vrot.lane.b32.xlu0 %v544, 8
          %v631 = vpop.permute.xlu0 %630
          %632 = vrot.lane.b32.xlu0 %v545, 8
          %v633 = vpop.permute.xlu0 %632
          %634 = vrot.lane.b32.xlu0 %v546, 8
          %v635 = vpop.permute.xlu0 %634
          %636 = vrot.lane.b32.xlu0 %v547, 8
          %v637 = vpop.permute.xlu0 %636
          %638 = vrot.lane.b32.xlu0 %v548, 8
          %v639 = vpop.permute.xlu0 %638
          %640 = vrot.lane.b32.xlu0 %v549, 8
          %v641 = vpop.permute.xlu0 %640
          %642 = vrot.lane.b32.xlu0 %v550, 8
          %v643 = vpop.permute.xlu0 %642
          %644 = vrot.lane.b32.xlu0 %v551, 8
          %v645 = vpop.permute.xlu0 %644
          %646 = vrot.lane.b32.xlu0 %v552, 8
          %v647 = vpop.permute.xlu0 %646
          %648 = vrot.lane.b32.xlu0 %v553, 8
          %v649 = vpop.permute.xlu0 %648
          %vm682 = vcmask 97344
          %683 = vst.msk [vmem:[#allocation2] sm:$0xff] %vm682, %v587
          %684 = vst.msk [vmem:[#allocation2 + $0x8] sm:$0xff] %vm682, %v589
          %685 = vst.msk [vmem:[#allocation2 + $0x10] sm:$0xff] %vm682, %v591
          %686 = vst.msk [vmem:[#allocation2 + $0x18] sm:$0xff] %vm682, %v593
          %687 = vst.msk [vmem:[#allocation2 + $0x20] sm:$0xff] %vm682, %v595
          %688 = vst.msk [vmem:[#allocation2 + $0x28] sm:$0xff] %vm682, %v597
          %689 = vst.msk [vmem:[#allocation2 + $0x30] sm:$0xff] %vm682, %v599
          %690 = vst.msk [vmem:[#allocation2 + $0x38] sm:$0xff] %vm682, %v601
          %691 = vst.msk [vmem:[#allocation2 + $0x40] sm:$0xff] %vm682, %v603
          %692 = vst.msk [vmem:[#allocation2 + $0x48] sm:$0xff] %vm682, %v605
          %693 = vst.msk [vmem:[#allocation2 + $0x50] sm:$0xff] %vm682, %v607
          %694 = vst.msk [vmem:[#allocation2 + $0x58] sm:$0xff] %vm682, %v609
          %695 = vst.msk [vmem:[#allocation2 + $0x60] sm:$0xff] %vm682, %v611
          %696 = vst.msk [vmem:[#allocation2 + $0x68] sm:$0xff] %vm682, %v613
          %697 = vst.msk [vmem:[#allocation2 + $0x70] sm:$0xff] %vm682, %v615
          %698 = vst.msk [vmem:[#allocation2 + $0x78] sm:$0xff] %vm682, %v617
          %699 = vst.msk [vmem:[#allocation2 + $0x80] sm:$0xff] %vm682, %v619
          %700 = vst.msk [vmem:[#allocation2 + $0x88] sm:$0xff] %vm682, %v621
          %701 = vst.msk [vmem:[#allocation2 + $0x90] sm:$0xff] %vm682, %v623
          %702 = vst.msk [vmem:[#allocation2 + $0x98] sm:$0xff] %vm682, %v625
          %703 = vst.msk [vmem:[#allocation2 + $0xa0] sm:$0xff] %vm682, %v627
          %704 = vst.msk [vmem:[#allocation2 + $0xa8] sm:$0xff] %vm682, %v629
          %705 = vst.msk [vmem:[#allocation2 + $0xb0] sm:$0xff] %vm682, %v631
          %706 = vst.msk [vmem:[#allocation2 + $0xb8] sm:$0xff] %vm682, %v633
          %707 = vst.msk [vmem:[#allocation2 + $0xc0] sm:$0xff] %vm682, %v635
          %708 = vst.msk [vmem:[#allocation2 + $0xc8] sm:$0xff] %vm682, %v637
          %709 = vst.msk [vmem:[#allocation2 + $0xd0] sm:$0xff] %vm682, %v639
          %710 = vst.msk [vmem:[#allocation2 + $0xd8] sm:$0xff] %vm682, %v641
          %711 = vst.msk [vmem:[#allocation2 + $0xe0] sm:$0xff] %vm682, %v643
          %712 = vst.msk [vmem:[#allocation2 + $0xe8] sm:$0xff] %vm682, %v645
          %713 = vst.msk [vmem:[#allocation2 + $0xf0] sm:$0xff] %vm682, %v647
          %714 = vst.msk [vmem:[#allocation2 + $0xf8] sm:$0xff] %vm682, %v649
          %s715 = sadd.s32 %s224, 1
          %s716 = smul.u32 %s715, 24
          %s717 = scalar_lea.vmem %s215, %s716
          %v718 = vld [vmem:[%s717] sm:$0xff]
          %v719 = vld [vmem:[%s717 + $0x8] sm:$0xff]
          %v720 = vld [vmem:[%s717 + $0x18] sm:$0xff]
          %v721 = vld [vmem:[%s717 + $0x20] sm:$0xff]
          %v722 = vld [vmem:[%s717 + $0x30] sm:$0xff]
          %v723 = vld [vmem:[%s717 + $0x38] sm:$0xff]
          %v724 = vld [vmem:[%s717 + $0x48] sm:$0xff]
          %v725 = vld [vmem:[%s717 + $0x50] sm:$0xff]
          %v726 = vld [vmem:[%s717 + $0x60] sm:$0xff]
          %v727 = vld [vmem:[%s717 + $0x68] sm:$0xff]
          %v728 = vld [vmem:[%s717 + $0x78] sm:$0xff]
          %v729 = vld [vmem:[%s717 + $0x80] sm:$0xff]
          %v730 = vld [vmem:[%s717 + $0x90] sm:$0xff]
          %v731 = vld [vmem:[%s717 + $0x98] sm:$0xff]
          %v732 = vld [vmem:[%s717 + $0xa8] sm:$0xff]
          %v733 = vld [vmem:[%s717 + $0xb0] sm:$0xff]
          %v734 = vld [vmem:[%s717 + $0xc0] sm:$0xff]
          %v735 = vld [vmem:[%s717 + $0xc8] sm:$0xff]
          %v736 = vld [vmem:[%s717 + $0xd8] sm:$0xff]
          %v737 = vld [vmem:[%s717 + $0xe0] sm:$0xff]
          %v738 = vld [vmem:[%s717 + $0xf0] sm:$0xff]
          %v739 = vld [vmem:[%s717 + $0xf8] sm:$0xff]
          %v740 = vld [vmem:[%s717 + $0x108] sm:$0xff]
          %v741 = vld [vmem:[%s717 + $0x110] sm:$0xff]
          %v742 = vld [vmem:[%s717 + $0x120] sm:$0xff]
          %v743 = vld [vmem:[%s717 + $0x128] sm:$0xff]
          %v744 = vld [vmem:[%s717 + $0x138] sm:$0xff]
          %v745 = vld [vmem:[%s717 + $0x140] sm:$0xff]
          %v746 = vld [vmem:[%s717 + $0x150] sm:$0xff]
          %v747 = vld [vmem:[%s717 + $0x158] sm:$0xff]
          %v748 = vld [vmem:[%s717 + $0x168] sm:$0xff]
          %v749 = vld [vmem:[%s717 + $0x170] sm:$0xff]
          %782 = vrot.lane.b32.xlu0 %v718, 12
          %v783 = vpop.permute.xlu0 %782
          %784 = vrot.lane.b32.xlu0 %v719, 12
          %v785 = vpop.permute.xlu0 %784
          %786 = vrot.lane.b32.xlu0 %v720, 12
          %v787 = vpop.permute.xlu0 %786
          %788 = vrot.lane.b32.xlu0 %v721, 12
          %v789 = vpop.permute.xlu0 %788
          %790 = vrot.lane.b32.xlu0 %v722, 12
          %v791 = vpop.permute.xlu0 %790
          %792 = vrot.lane.b32.xlu0 %v723, 12
          %v793 = vpop.permute.xlu0 %792
          %794 = vrot.lane.b32.xlu0 %v724, 12
          %v795 = vpop.permute.xlu0 %794
          %796 = vrot.lane.b32.xlu0 %v725, 12
          %v797 = vpop.permute.xlu0 %796
          %798 = vrot.lane.b32.xlu0 %v726, 12
          %v799 = vpop.permute.xlu0 %798
          %800 = vrot.lane.b32.xlu0 %v727, 12
          %v801 = vpop.permute.xlu0 %800
          %802 = vrot.lane.b32.xlu0 %v728, 12
          %v803 = vpop.permute.xlu0 %802
          %804 = vrot.lane.b32.xlu0 %v729, 12
          %v805 = vpop.permute.xlu0 %804
          %806 = vrot.lane.b32.xlu0 %v730, 12
          %v807 = vpop.permute.xlu0 %806
          %808 = vrot.lane.b32.xlu0 %v731, 12
          %v809 = vpop.permute.xlu0 %808
          %810 = vrot.lane.b32.xlu0 %v732, 12
          %v811 = vpop.permute.xlu0 %810
          %812 = vrot.lane.b32.xlu0 %v733, 12
          %v813 = vpop.permute.xlu0 %812
          %814 = vrot.lane.b32.xlu0 %v734, 12
          %v815 = vpop.permute.xlu0 %814
          %816 = vrot.lane.b32.xlu0 %v735, 12
          %v817 = vpop.permute.xlu0 %816
          %818 = vrot.lane.b32.xlu0 %v736, 12
          %v819 = vpop.permute.xlu0 %818
          %820 = vrot.lane.b32.xlu0 %v737, 12
          %v821 = vpop.permute.xlu0 %820
          %822 = vrot.lane.b32.xlu0 %v738, 12
          %v823 = vpop.permute.xlu0 %822
          %824 = vrot.lane.b32.xlu0 %v739, 12
          %v825 = vpop.permute.xlu0 %824
          %826 = vrot.lane.b32.xlu0 %v740, 12
          %v827 = vpop.permute.xlu0 %826
          %828 = vrot.lane.b32.xlu0 %v741, 12
          %v829 = vpop.permute.xlu0 %828
          %830 = vrot.lane.b32.xlu0 %v742, 12
          %v831 = vpop.permute.xlu0 %830
          %832 = vrot.lane.b32.xlu0 %v743, 12
          %v833 = vpop.permute.xlu0 %832
          %834 = vrot.lane.b32.xlu0 %v744, 12
          %v835 = vpop.permute.xlu0 %834
          %836 = vrot.lane.b32.xlu0 %v745, 12
          %v837 = vpop.permute.xlu0 %836
          %838 = vrot.lane.b32.xlu0 %v746, 12
          %v839 = vpop.permute.xlu0 %838
          %840 = vrot.lane.b32.xlu0 %v747, 12
          %v841 = vpop.permute.xlu0 %840
          %842 = vrot.lane.b32.xlu0 %v748, 12
          %v843 = vpop.permute.xlu0 %842
          %844 = vrot.lane.b32.xlu0 %v749, 12
          %v845 = vpop.permute.xlu0 %844
          %vm878 = vcmask 130144
          %879 = vst.msk [vmem:[#allocation2] sm:$0xff] %vm878, %v783
          %880 = vst.msk [vmem:[#allocation2 + $0x8] sm:$0xff] %vm878, %v785
          %881 = vst.msk [vmem:[#allocation2 + $0x10] sm:$0xff] %vm878, %v787
          %882 = vst.msk [vmem:[#allocation2 + $0x18] sm:$0xff] %vm878, %v789
          %883 = vst.msk [vmem:[#allocation2 + $0x20] sm:$0xff] %vm878, %v791
          %884 = vst.msk [vmem:[#allocation2 + $0x28] sm:$0xff] %vm878, %v793
          %885 = vst.msk [vmem:[#allocation2 + $0x30] sm:$0xff] %vm878, %v795
          %886 = vst.msk [vmem:[#allocation2 + $0x38] sm:$0xff] %vm878, %v797
          %887 = vst.msk [vmem:[#allocation2 + $0x40] sm:$0xff] %vm878, %v799
          %888 = vst.msk [vmem:[#allocation2 + $0x48] sm:$0xff] %vm878, %v801
          %889 = vst.msk [vmem:[#allocation2 + $0x50] sm:$0xff] %vm878, %v803
          %890 = vst.msk [vmem:[#allocation2 + $0x58] sm:$0xff] %vm878, %v805
          %891 = vst.msk [vmem:[#allocation2 + $0x60] sm:$0xff] %vm878, %v807
          %892 = vst.msk [vmem:[#allocation2 + $0x68] sm:$0xff] %vm878, %v809
          %893 = vst.msk [vmem:[#allocation2 + $0x70] sm:$0xff] %vm878, %v811
          %894 = vst.msk [vmem:[#allocation2 + $0x78] sm:$0xff] %vm878, %v813
          %895 = vst.msk [vmem:[#allocation2 + $0x80] sm:$0xff] %vm878, %v815
          %896 = vst.msk [vmem:[#allocation2 + $0x88] sm:$0xff] %vm878, %v817
          %897 = vst.msk [vmem:[#allocation2 + $0x90] sm:$0xff] %vm878, %v819
          %898 = vst.msk [vmem:[#allocation2 + $0x98] sm:$0xff] %vm878, %v821
          %899 = vst.msk [vmem:[#allocation2 + $0xa0] sm:$0xff] %vm878, %v823
          %900 = vst.msk [vmem:[#allocation2 + $0xa8] sm:$0xff] %vm878, %v825
          %901 = vst.msk [vmem:[#allocation2 + $0xb0] sm:$0xff] %vm878, %v827
          %902 = vst.msk [vmem:[#allocation2 + $0xb8] sm:$0xff] %vm878, %v829
          %903 = vst.msk [vmem:[#allocation2 + $0xc0] sm:$0xff] %vm878, %v831
          %904 = vst.msk [vmem:[#allocation2 + $0xc8] sm:$0xff] %vm878, %v833
          %905 = vst.msk [vmem:[#allocation2 + $0xd0] sm:$0xff] %vm878, %v835
          %906 = vst.msk [vmem:[#allocation2 + $0xd8] sm:$0xff] %vm878, %v837
          %907 = vst.msk [vmem:[#allocation2 + $0xe0] sm:$0xff] %vm878, %v839
          %908 = vst.msk [vmem:[#allocation2 + $0xe8] sm:$0xff] %vm878, %v841
          %909 = vst.msk [vmem:[#allocation2 + $0xf0] sm:$0xff] %vm878, %v843
          %910 = vst.msk [vmem:[#allocation2 + $0xf8] sm:$0xff] %vm878, %v845
          %v911 = vld [vmem:[%s717 + $0x1] sm:$0xff]
          %v912 = vld [vmem:[%s717 + $0x9] sm:$0xff]
          %v913 = vld [vmem:[%s717 + $0x19] sm:$0xff]
          %v914 = vld [vmem:[%s717 + $0x21] sm:$0xff]
          %v915 = vld [vmem:[%s717 + $0x31] sm:$0xff]
          %v916 = vld [vmem:[%s717 + $0x39] sm:$0xff]
          %v917 = vld [vmem:[%s717 + $0x49] sm:$0xff]
          %v918 = vld [vmem:[%s717 + $0x51] sm:$0xff]
          %v919 = vld [vmem:[%s717 + $0x61] sm:$0xff]
          %v920 = vld [vmem:[%s717 + $0x69] sm:$0xff]
          %v921 = vld [vmem:[%s717 + $0x79] sm:$0xff]
          %v922 = vld [vmem:[%s717 + $0x81] sm:$0xff]
          %v923 = vld [vmem:[%s717 + $0x91] sm:$0xff]
          %v924 = vld [vmem:[%s717 + $0x99] sm:$0xff]
          %v925 = vld [vmem:[%s717 + $0xa9] sm:$0xff]
          %v926 = vld [vmem:[%s717 + $0xb1] sm:$0xff]
          %v927 = vld [vmem:[%s717 + $0xc1] sm:$0xff]
          %v928 = vld [vmem:[%s717 + $0xc9] sm:$0xff]
          %v929 = vld [vmem:[%s717 + $0xd9] sm:$0xff]
          %v930 = vld [vmem:[%s717 + $0xe1] sm:$0xff]
          %v931 = vld [vmem:[%s717 + $0xf1] sm:$0xff]
          %v932 = vld [vmem:[%s717 + $0xf9] sm:$0xff]
          %v933 = vld [vmem:[%s717 + $0x109] sm:$0xff]
          %v934 = vld [vmem:[%s717 + $0x111] sm:$0xff]
          %v935 = vld [vmem:[%s717 + $0x121] sm:$0xff]
          %v936 = vld [vmem:[%s717 + $0x129] sm:$0xff]
          %v937 = vld [vmem:[%s717 + $0x139] sm:$0xff]
          %v938 = vld [vmem:[%s717 + $0x141] sm:$0xff]
          %v939 = vld [vmem:[%s717 + $0x151] sm:$0xff]
          %v940 = vld [vmem:[%s717 + $0x159] sm:$0xff]
          %v941 = vld [vmem:[%s717 + $0x169] sm:$0xff]
          %v942 = vld [vmem:[%s717 + $0x171] sm:$0xff]
          %975 = vrot.lane.b32.xlu0 %v911, 16
          %v976 = vpop.permute.xlu0 %975
          %977 = vrot.lane.b32.xlu0 %v912, 16
          %v978 = vpop.permute.xlu0 %977
          %979 = vrot.lane.b32.xlu0 %v913, 16
          %v980 = vpop.permute.xlu0 %979
          %981 = vrot.lane.b32.xlu0 %v914, 16
          %v982 = vpop.permute.xlu0 %981
          %983 = vrot.lane.b32.xlu0 %v915, 16
          %v984 = vpop.permute.xlu0 %983
          %985 = vrot.lane.b32.xlu0 %v916, 16
          %v986 = vpop.permute.xlu0 %985
          %987 = vrot.lane.b32.xlu0 %v917, 16
          %v988 = vpop.permute.xlu0 %987
          %989 = vrot.lane.b32.xlu0 %v918, 16
          %v990 = vpop.permute.xlu0 %989
          %991 = vrot.lane.b32.xlu0 %v919, 16
          %v992 = vpop.permute.xlu0 %991
          %993 = vrot.lane.b32.xlu0 %v920, 16
          %v994 = vpop.permute.xlu0 %993
          %995 = vrot.lane.b32.xlu0 %v921, 16
          %v996 = vpop.permute.xlu0 %995
          %997 = vrot.lane.b32.xlu0 %v922, 16
          %v998 = vpop.permute.xlu0 %997
          %999 = vrot.lane.b32.xlu0 %v923, 16
          %v1000 = vpop.permute.xlu0 %999
          %1001 = vrot.lane.b32.xlu0 %v924, 16
          %v1002 = vpop.permute.xlu0 %1001
          %1003 = vrot.lane.b32.xlu0 %v925, 16
          %v1004 = vpop.permute.xlu0 %1003
          %1005 = vrot.lane.b32.xlu0 %v926, 16
          %v1006 = vpop.permute.xlu0 %1005
          %1007 = vrot.lane.b32.xlu0 %v927, 16
          %v1008 = vpop.permute.xlu0 %1007
          %1009 = vrot.lane.b32.xlu0 %v928, 16
          %v1010 = vpop.permute.xlu0 %1009
          %1011 = vrot.lane.b32.xlu0 %v929, 16
          %v1012 = vpop.permute.xlu0 %1011
          %1013 = vrot.lane.b32.xlu0 %v930, 16
          %v1014 = vpop.permute.xlu0 %1013
          %1015 = vrot.lane.b32.xlu0 %v931, 16
          %v1016 = vpop.permute.xlu0 %1015
          %1017 = vrot.lane.b32.xlu0 %v932, 16
          %v1018 = vpop.permute.xlu0 %1017
          %1019 = vrot.lane.b32.xlu0 %v933, 16
          %v1020 = vpop.permute.xlu0 %1019
          %1021 = vrot.lane.b32.xlu0 %v934, 16
          %v1022 = vpop.permute.xlu0 %1021
          %1023 = vrot.lane.b32.xlu0 %v935, 16
          %v1024 = vpop.permute.xlu0 %1023
          %1025 = vrot.lane.b32.xlu0 %v936, 16
          %v1026 = vpop.permute.xlu0 %1025
          %1027 = vrot.lane.b32.xlu0 %v937, 16
          %v1028 = vpop.permute.xlu0 %1027
          %1029 = vrot.lane.b32.xlu0 %v938, 16
          %v1030 = vpop.permute.xlu0 %1029
          %1031 = vrot.lane.b32.xlu0 %v939, 16
          %v1032 = vpop.permute.xlu0 %1031
          %1033 = vrot.lane.b32.xlu0 %v940, 16
          %v1034 = vpop.permute.xlu0 %1033
          %1035 = vrot.lane.b32.xlu0 %v941, 16
          %v1036 = vpop.permute.xlu0 %1035
          %1037 = vrot.lane.b32.xlu0 %v942, 16
          %v1038 = vpop.permute.xlu0 %1037
          %vm1071 = vcmask 162944
          %1072 = vst.msk [vmem:[#allocation2] sm:$0xff] %vm1071, %v976
          %1073 = vst.msk [vmem:[#allocation2 + $0x8] sm:$0xff] %vm1071, %v978
          %1074 = vst.msk [vmem:[#allocation2 + $0x10] sm:$0xff] %vm1071, %v980
          %1075 = vst.msk [vmem:[#allocation2 + $0x18] sm:$0xff] %vm1071, %v982
          %1076 = vst.msk [vmem:[#allocation2 + $0x20] sm:$0xff] %vm1071, %v984
          %1077 = vst.msk [vmem:[#allocation2 + $0x28] sm:$0xff] %vm1071, %v986
          %1078 = vst.msk [vmem:[#allocation2 + $0x30] sm:$0xff] %vm1071, %v988
          %1079 = vst.msk [vmem:[#allocation2 + $0x38] sm:$0xff] %vm1071, %v990
          %1080 = vst.msk [vmem:[#allocation2 + $0x40] sm:$0xff] %vm1071, %v992
          %1081 = vst.msk [vmem:[#allocation2 + $0x48] sm:$0xff] %vm1071, %v994
          %1082 = vst.msk [vmem:[#allocation2 + $0x50] sm:$0xff] %vm1071, %v996
          %1083 = vst.msk [vmem:[#allocation2 + $0x58] sm:$0xff] %vm1071, %v998
          %1084 = vst.msk [vmem:[#allocation2 + $0x60] sm:$0xff] %vm1071, %v1000
          %1085 = vst.msk [vmem:[#allocation2 + $0x68] sm:$0xff] %vm1071, %v1002
          %1086 = vst.msk [vmem:[#allocation2 + $0x70] sm:$0xff] %vm1071, %v1004
          %1087 = vst.msk [vmem:[#allocation2 + $0x78] sm:$0xff] %vm1071, %v1006
          %1088 = vst.msk [vmem:[#allocation2 + $0x80] sm:$0xff] %vm1071, %v1008
          %1089 = vst.msk [vmem:[#allocation2 + $0x88] sm:$0xff] %vm1071, %v1010
          %1090 = vst.msk [vmem:[#allocation2 + $0x90] sm:$0xff] %vm1071, %v1012
          %1091 = vst.msk [vmem:[#allocation2 + $0x98] sm:$0xff] %vm1071, %v1014
          %1092 = vst.msk [vmem:[#allocation2 + $0xa0] sm:$0xff] %vm1071, %v1016
          %1093 = vst.msk [vmem:[#allocation2 + $0xa8] sm:$0xff] %vm1071, %v1018
          %1094 = vst.msk [vmem:[#allocation2 + $0xb0] sm:$0xff] %vm1071, %v1020
          %1095 = vst.msk [vmem:[#allocation2 + $0xb8] sm:$0xff] %vm1071, %v1022
          %1096 = vst.msk [vmem:[#allocation2 + $0xc0] sm:$0xff] %vm1071, %v1024
          %1097 = vst.msk [vmem:[#allocation2 + $0xc8] sm:$0xff] %vm1071, %v1026
          %1098 = vst.msk [vmem:[#allocation2 + $0xd0] sm:$0xff] %vm1071, %v1028
          %1099 = vst.msk [vmem:[#allocation2 + $0xd8] sm:$0xff] %vm1071, %v1030
          %1100 = vst.msk [vmem:[#allocation2 + $0xe0] sm:$0xff] %vm1071, %v1032
          %1101 = vst.msk [vmem:[#allocation2 + $0xe8] sm:$0xff] %vm1071, %v1034
          %1102 = vst.msk [vmem:[#allocation2 + $0xf0] sm:$0xff] %vm1071, %v1036
          %1103 = vst.msk [vmem:[#allocation2 + $0xf8] sm:$0xff] %vm1071, %v1038
          %v1104 = vld [vmem:[%s717 + $0x2] sm:$0xff]
          %v1105 = vld [vmem:[%s717 + $0xa] sm:$0xff]
          %v1106 = vld [vmem:[%s717 + $0x1a] sm:$0xff]
          %v1107 = vld [vmem:[%s717 + $0x22] sm:$0xff]
          %v1108 = vld [vmem:[%s717 + $0x32] sm:$0xff]
          %v1109 = vld [vmem:[%s717 + $0x3a] sm:$0xff]
          %v1110 = vld [vmem:[%s717 + $0x4a] sm:$0xff]
          %v1111 = vld [vmem:[%s717 + $0x52] sm:$0xff]
          %v1112 = vld [vmem:[%s717 + $0x62] sm:$0xff]
          %v1113 = vld [vmem:[%s717 + $0x6a] sm:$0xff]
          %v1114 = vld [vmem:[%s717 + $0x7a] sm:$0xff]
          %v1115 = vld [vmem:[%s717 + $0x82] sm:$0xff]
          %v1116 = vld [vmem:[%s717 + $0x92] sm:$0xff]
          %v1117 = vld [vmem:[%s717 + $0x9a] sm:$0xff]
          %v1118 = vld [vmem:[%s717 + $0xaa] sm:$0xff]
          %v1119 = vld [vmem:[%s717 + $0xb2] sm:$0xff]
          %v1120 = vld [vmem:[%s717 + $0xc2] sm:$0xff]
          %v1121 = vld [vmem:[%s717 + $0xca] sm:$0xff]
          %v1122 = vld [vmem:[%s717 + $0xda] sm:$0xff]
          %v1123 = vld [vmem:[%s717 + $0xe2] sm:$0xff]
          %v1124 = vld [vmem:[%s717 + $0xf2] sm:$0xff]
          %v1125 = vld [vmem:[%s717 + $0xfa] sm:$0xff]
          %v1126 = vld [vmem:[%s717 + $0x10a] sm:$0xff]
          %v1127 = vld [vmem:[%s717 + $0x112] sm:$0xff]
          %v1128 = vld [vmem:[%s717 + $0x122] sm:$0xff]
          %v1129 = vld [vmem:[%s717 + $0x12a] sm:$0xff]
          %v1130 = vld [vmem:[%s717 + $0x13a] sm:$0xff]
          %v1131 = vld [vmem:[%s717 + $0x142] sm:$0xff]
          %v1132 = vld [vmem:[%s717 + $0x152] sm:$0xff]
          %v1133 = vld [vmem:[%s717 + $0x15a] sm:$0xff]
          %v1134 = vld [vmem:[%s717 + $0x16a] sm:$0xff]
          %v1135 = vld [vmem:[%s717 + $0x172] sm:$0xff]
          %1168 = vrot.lane.b32.xlu0 %v1104, 20
          %v1169 = vpop.permute.xlu0 %1168
          %1170 = vrot.lane.b32.xlu0 %v1105, 20
          %v1171 = vpop.permute.xlu0 %1170
          %1172 = vrot.lane.b32.xlu0 %v1106, 20
          %v1173 = vpop.permute.xlu0 %1172
          %1174 = vrot.lane.b32.xlu0 %v1107, 20
          %v1175 = vpop.permute.xlu0 %1174
          %1176 = vrot.lane.b32.xlu0 %v1108, 20
          %v1177 = vpop.permute.xlu0 %1176
          %1178 = vrot.lane.b32.xlu0 %v1109, 20
          %v1179 = vpop.permute.xlu0 %1178
          %1180 = vrot.lane.b32.xlu0 %v1110, 20
          %v1181 = vpop.permute.xlu0 %1180
          %1182 = vrot.lane.b32.xlu0 %v1111, 20
          %v1183 = vpop.permute.xlu0 %1182
          %1184 = vrot.lane.b32.xlu0 %v1112, 20
          %v1185 = vpop.permute.xlu0 %1184
          %1186 = vrot.lane.b32.xlu0 %v1113, 20
          %v1187 = vpop.permute.xlu0 %1186
          %1188 = vrot.lane.b32.xlu0 %v1114, 20
          %v1189 = vpop.permute.xlu0 %1188
          %1190 = vrot.lane.b32.xlu0 %v1115, 20
          %v1191 = vpop.permute.xlu0 %1190
          %1192 = vrot.lane.b32.xlu0 %v1116, 20
          %v1193 = vpop.permute.xlu0 %1192
          %1194 = vrot.lane.b32.xlu0 %v1117, 20
          %v1195 = vpop.permute.xlu0 %1194
          %1196 = vrot.lane.b32.xlu0 %v1118, 20
          %v1197 = vpop.permute.xlu0 %1196
          %1198 = vrot.lane.b32.xlu0 %v1119, 20
          %v1199 = vpop.permute.xlu0 %1198
          %1200 = vrot.lane.b32.xlu0 %v1120, 20
          %v1201 = vpop.permute.xlu0 %1200
          %1202 = vrot.lane.b32.xlu0 %v1121, 20
          %v1203 = vpop.permute.xlu0 %1202
          %1204 = vrot.lane.b32.xlu0 %v1122, 20
          %v1205 = vpop.permute.xlu0 %1204
          %1206 = vrot.lane.b32.xlu0 %v1123, 20
          %v1207 = vpop.permute.xlu0 %1206
          %1208 = vrot.lane.b32.xlu0 %v1124, 20
          %v1209 = vpop.permute.xlu0 %1208
          %1210 = vrot.lane.b32.xlu0 %v1125, 20
          %v1211 = vpop.permute.xlu0 %1210
          %1212 = vrot.lane.b32.xlu0 %v1126, 20
          %v1213 = vpop.permute.xlu0 %1212
          %1214 = vrot.lane.b32.xlu0 %v1127, 20
          %v1215 = vpop.permute.xlu0 %1214
          %1216 = vrot.lane.b32.xlu0 %v1128, 20
          %v1217 = vpop.permute.xlu0 %1216
          %1218 = vrot.lane.b32.xlu0 %v1129, 20
          %v1219 = vpop.permute.xlu0 %1218
          %1220 = vrot.lane.b32.xlu0 %v1130, 20
          %v1221 = vpop.permute.xlu0 %1220
          %1222 = vrot.lane.b32.xlu0 %v1131, 20
          %v1223 = vpop.permute.xlu0 %1222
          %1224 = vrot.lane.b32.xlu0 %v1132, 20
          %v1225 = vpop.permute.xlu0 %1224
          %1226 = vrot.lane.b32.xlu0 %v1133, 20
          %v1227 = vpop.permute.xlu0 %1226
          %1228 = vrot.lane.b32.xlu0 %v1134, 20
          %v1229 = vpop.permute.xlu0 %1228
          %1230 = vrot.lane.b32.xlu0 %v1135, 20
          %v1231 = vpop.permute.xlu0 %1230
          %vm1264 = vcmask 195744
          %1265 = vst.msk [vmem:[#allocation2] sm:$0xff] %vm1264, %v1169
          %1266 = vst.msk [vmem:[#allocation2 + $0x8] sm:$0xff] %vm1264, %v1171
          %1267 = vst.msk [vmem:[#allocation2 + $0x10] sm:$0xff] %vm1264, %v1173
          %1268 = vst.msk [vmem:[#allocation2 + $0x18] sm:$0xff] %vm1264, %v1175
          %1269 = vst.msk [vmem:[#allocation2 + $0x20] sm:$0xff] %vm1264, %v1177
          %1270 = vst.msk [vmem:[#allocation2 + $0x28] sm:$0xff] %vm1264, %v1179
          %1271 = vst.msk [vmem:[#allocation2 + $0x30] sm:$0xff] %vm1264, %v1181
          %1272 = vst.msk [vmem:[#allocation2 + $0x38] sm:$0xff] %vm1264, %v1183
          %1273 = vst.msk [vmem:[#allocation2 + $0x40] sm:$0xff] %vm1264, %v1185
          %1274 = vst.msk [vmem:[#allocation2 + $0x48] sm:$0xff] %vm1264, %v1187
          %1275 = vst.msk [vmem:[#allocation2 + $0x50] sm:$0xff] %vm1264, %v1189
          %1276 = vst.msk [vmem:[#allocation2 + $0x58] sm:$0xff] %vm1264, %v1191
          %1277 = vst.msk [vmem:[#allocation2 + $0x60] sm:$0xff] %vm1264, %v1193
          %1278 = vst.msk [vmem:[#allocation2 + $0x68] sm:$0xff] %vm1264, %v1195
          %1279 = vst.msk [vmem:[#allocation2 + $0x70] sm:$0xff] %vm1264, %v1197
          %1280 = vst.msk [vmem:[#allocation2 + $0x78] sm:$0xff] %vm1264, %v1199
          %1281 = vst.msk [vmem:[#allocation2 + $0x80] sm:$0xff] %vm1264, %v1201
          %1282 = vst.msk [vmem:[#allocation2 + $0x88] sm:$0xff] %vm1264, %v1203
          %1283 = vst.msk [vmem:[#allocation2 + $0x90] sm:$0xff] %vm1264, %v1205
          %1284 = vst.msk [vmem:[#allocation2 + $0x98] sm:$0xff] %vm1264, %v1207
          %1285 = vst.msk [vmem:[#allocation2 + $0xa0] sm:$0xff] %vm1264, %v1209
          %1286 = vst.msk [vmem:[#allocation2 + $0xa8] sm:$0xff] %vm1264, %v1211
          %1287 = vst.msk [vmem:[#allocation2 + $0xb0] sm:$0xff] %vm1264, %v1213
          %1288 = vst.msk [vmem:[#allocation2 + $0xb8] sm:$0xff] %vm1264, %v1215
          %1289 = vst.msk [vmem:[#allocation2 + $0xc0] sm:$0xff] %vm1264, %v1217
          %1290 = vst.msk [vmem:[#allocation2 + $0xc8] sm:$0xff] %vm1264, %v1219
          %1291 = vst.msk [vmem:[#allocation2 + $0xd0] sm:$0xff] %vm1264, %v1221
          %1292 = vst.msk [vmem:[#allocation2 + $0xd8] sm:$0xff] %vm1264, %v1223
          %1293 = vst.msk [vmem:[#allocation2 + $0xe0] sm:$0xff] %vm1264, %v1225
          %1294 = vst.msk [vmem:[#allocation2 + $0xe8] sm:$0xff] %vm1264, %v1227
          %1295 = vst.msk [vmem:[#allocation2 + $0xf0] sm:$0xff] %vm1264, %v1229
          %1296 = vst.msk [vmem:[#allocation2 + $0xf8] sm:$0xff] %vm1264, %v1231
          %s1297 = sadd.s32 %s224, 2
          %s1298 = smul.u32 %s1297, 24
          %s1299 = scalar_lea.vmem %s215, %s1298
          %v1300 = vld [vmem:[%s1299] sm:$0xff]
          %v1301 = vld [vmem:[%s1299 + $0x8] sm:$0xff]
          %v1302 = vld [vmem:[%s1299 + $0x18] sm:$0xff]
          %v1303 = vld [vmem:[%s1299 + $0x20] sm:$0xff]
          %v1304 = vld [vmem:[%s1299 + $0x30] sm:$0xff]
          %v1305 = vld [vmem:[%s1299 + $0x38] sm:$0xff]
          %v1306 = vld [vmem:[%s1299 + $0x48] sm:$0xff]
          %v1307 = vld [vmem:[%s1299 + $0x50] sm:$0xff]
          %v1308 = vld [vmem:[%s1299 + $0x60] sm:$0xff]
          %v1309 = vld [vmem:[%s1299 + $0x68] sm:$0xff]
          %v1310 = vld [vmem:[%s1299 + $0x78] sm:$0xff]
          %v1311 = vld [vmem:[%s1299 + $0x80] sm:$0xff]
          %v1312 = vld [vmem:[%s1299 + $0x90] sm:$0xff]
          %v1313 = vld [vmem:[%s1299 + $0x98] sm:$0xff]
          %v1314 = vld [vmem:[%s1299 + $0xa8] sm:$0xff]
          %v1315 = vld [vmem:[%s1299 + $0xb0] sm:$0xff]
          %v1316 = vld [vmem:[%s1299 + $0xc0] sm:$0xff]
          %v1317 = vld [vmem:[%s1299 + $0xc8] sm:$0xff]
          %v1318 = vld [vmem:[%s1299 + $0xd8] sm:$0xff]
          %v1319 = vld [vmem:[%s1299 + $0xe0] sm:$0xff]
          %v1320 = vld [vmem:[%s1299 + $0xf0] sm:$0xff]
          %v1321 = vld [vmem:[%s1299 + $0xf8] sm:$0xff]
          %v1322 = vld [vmem:[%s1299 + $0x108] sm:$0xff]
          %v1323 = vld [vmem:[%s1299 + $0x110] sm:$0xff]
          %v1324 = vld [vmem:[%s1299 + $0x120] sm:$0xff]
          %v1325 = vld [vmem:[%s1299 + $0x128] sm:$0xff]
          %v1326 = vld [vmem:[%s1299 + $0x138] sm:$0xff]
          %v1327 = vld [vmem:[%s1299 + $0x140] sm:$0xff]
          %v1328 = vld [vmem:[%s1299 + $0x150] sm:$0xff]
          %v1329 = vld [vmem:[%s1299 + $0x158] sm:$0xff]
          %v1330 = vld [vmem:[%s1299 + $0x168] sm:$0xff]
          %v1331 = vld [vmem:[%s1299 + $0x170] sm:$0xff]
          %1364 = vrot.lane.b32.xlu0 %v1300, 24
          %v1365 = vpop.permute.xlu0 %1364
          %1366 = vrot.lane.b32.xlu0 %v1301, 24
          %v1367 = vpop.permute.xlu0 %1366
          %1368 = vrot.lane.b32.xlu0 %v1302, 24
          %v1369 = vpop.permute.xlu0 %1368
          %1370 = vrot.lane.b32.xlu0 %v1303, 24
          %v1371 = vpop.permute.xlu0 %1370
          %1372 = vrot.lane.b32.xlu0 %v1304, 24
          %v1373 = vpop.permute.xlu0 %1372
          %1374 = vrot.lane.b32.xlu0 %v1305, 24
          %v1375 = vpop.permute.xlu0 %1374
          %1376 = vrot.lane.b32.xlu0 %v1306, 24
          %v1377 = vpop.permute.xlu0 %1376
          %1378 = vrot.lane.b32.xlu0 %v1307, 24
          %v1379 = vpop.permute.xlu0 %1378
          %1380 = vrot.lane.b32.xlu0 %v1308, 24
          %v1381 = vpop.permute.xlu0 %1380
          %1382 = vrot.lane.b32.xlu0 %v1309, 24
          %v1383 = vpop.permute.xlu0 %1382
          %1384 = vrot.lane.b32.xlu0 %v1310, 24
          %v1385 = vpop.permute.xlu0 %1384
          %1386 = vrot.lane.b32.xlu0 %v1311, 24
          %v1387 = vpop.permute.xlu0 %1386
          %1388 = vrot.lane.b32.xlu0 %v1312, 24
          %v1389 = vpop.permute.xlu0 %1388
          %1390 = vrot.lane.b32.xlu0 %v1313, 24
          %v1391 = vpop.permute.xlu0 %1390
          %1392 = vrot.lane.b32.xlu0 %v1314, 24
          %v1393 = vpop.permute.xlu0 %1392
          %1394 = vrot.lane.b32.xlu0 %v1315, 24
          %v1395 = vpop.permute.xlu0 %1394
          %1396 = vrot.lane.b32.xlu0 %v1316, 24
          %v1397 = vpop.permute.xlu0 %1396
          %1398 = vrot.lane.b32.xlu0 %v1317, 24
          %v1399 = vpop.permute.xlu0 %1398
          %1400 = vrot.lane.b32.xlu0 %v1318, 24
          %v1401 = vpop.permute.xlu0 %1400
          %1402 = vrot.lane.b32.xlu0 %v1319, 24
          %v1403 = vpop.permute.xlu0 %1402
          %1404 = vrot.lane.b32.xlu0 %v1320, 24
          %v1405 = vpop.permute.xlu0 %1404
          %1406 = vrot.lane.b32.xlu0 %v1321, 24
          %v1407 = vpop.permute.xlu0 %1406
          %1408 = vrot.lane.b32.xlu0 %v1322, 24
          %v1409 = vpop.permute.xlu0 %1408
          %1410 = vrot.lane.b32.xlu0 %v1323, 24
          %v1411 = vpop.permute.xlu0 %1410
          %1412 = vrot.lane.b32.xlu0 %v1324, 24
          %v1413 = vpop.permute.xlu0 %1412
          %1414 = vrot.lane.b32.xlu0 %v1325, 24
          %v1415 = vpop.permute.xlu0 %1414
          %1416 = vrot.lane.b32.xlu0 %v1326, 24
          %v1417 = vpop.permute.xlu0 %1416
          %1418 = vrot.lane.b32.xlu0 %v1327, 24
          %v1419 = vpop.permute.xlu0 %1418
          %1420 = vrot.lane.b32.xlu0 %v1328, 24
          %v1421 = vpop.permute.xlu0 %1420
          %1422 = vrot.lane.b32.xlu0 %v1329, 24
          %v1423 = vpop.permute.xlu0 %1422
          %1424 = vrot.lane.b32.xlu0 %v1330, 24
          %v1425 = vpop.permute.xlu0 %1424
          %1426 = vrot.lane.b32.xlu0 %v1331, 24
          %v1427 = vpop.permute.xlu0 %1426
          %vm1460 = vcmask 228544
          %1461 = vst.msk [vmem:[#allocation2] sm:$0xff] %vm1460, %v1365
          %1462 = vst.msk [vmem:[#allocation2 + $0x8] sm:$0xff] %vm1460, %v1367
          %1463 = vst.msk [vmem:[#allocation2 + $0x10] sm:$0xff] %vm1460, %v1369
          %1464 = vst.msk [vmem:[#allocation2 + $0x18] sm:$0xff] %vm1460, %v1371
          %1465 = vst.msk [vmem:[#allocation2 + $0x20] sm:$0xff] %vm1460, %v1373
          %1466 = vst.msk [vmem:[#allocation2 + $0x28] sm:$0xff] %vm1460, %v1375
          %1467 = vst.msk [vmem:[#allocation2 + $0x30] sm:$0xff] %vm1460, %v1377
          %1468 = vst.msk [vmem:[#allocation2 + $0x38] sm:$0xff] %vm1460, %v1379
          %1469 = vst.msk [vmem:[#allocation2 + $0x40] sm:$0xff] %vm1460, %v1381
          %1470 = vst.msk [vmem:[#allocation2 + $0x48] sm:$0xff] %vm1460, %v1383
          %1471 = vst.msk [vmem:[#allocation2 + $0x50] sm:$0xff] %vm1460, %v1385
          %1472 = vst.msk [vmem:[#allocation2 + $0x58] sm:$0xff] %vm1460, %v1387
          %1473 = vst.msk [vmem:[#allocation2 + $0x60] sm:$0xff] %vm1460, %v1389
          %1474 = vst.msk [vmem:[#allocation2 + $0x68] sm:$0xff] %vm1460, %v1391
          %1475 = vst.msk [vmem:[#allocation2 + $0x70] sm:$0xff] %vm1460, %v1393
          %1476 = vst.msk [vmem:[#allocation2 + $0x78] sm:$0xff] %vm1460, %v1395
          %1477 = vst.msk [vmem:[#allocation2 + $0x80] sm:$0xff] %vm1460, %v1397
          %1478 = vst.msk [vmem:[#allocation2 + $0x88] sm:$0xff] %vm1460, %v1399
          %1479 = vst.msk [vmem:[#allocation2 + $0x90] sm:$0xff] %vm1460, %v1401
          %1480 = vst.msk [vmem:[#allocation2 + $0x98] sm:$0xff] %vm1460, %v1403
          %1481 = vst.msk [vmem:[#allocation2 + $0xa0] sm:$0xff] %vm1460, %v1405
          %1482 = vst.msk [vmem:[#allocation2 + $0xa8] sm:$0xff] %vm1460, %v1407
          %1483 = vst.msk [vmem:[#allocation2 + $0xb0] sm:$0xff] %vm1460, %v1409
          %1484 = vst.msk [vmem:[#allocation2 + $0xb8] sm:$0xff] %vm1460, %v1411
          %1485 = vst.msk [vmem:[#allocation2 + $0xc0] sm:$0xff] %vm1460, %v1413
          %1486 = vst.msk [vmem:[#allocation2 + $0xc8] sm:$0xff] %vm1460, %v1415
          %1487 = vst.msk [vmem:[#allocation2 + $0xd0] sm:$0xff] %vm1460, %v1417
          %1488 = vst.msk [vmem:[#allocation2 + $0xd8] sm:$0xff] %vm1460, %v1419
          %1489 = vst.msk [vmem:[#allocation2 + $0xe0] sm:$0xff] %vm1460, %v1421
          %1490 = vst.msk [vmem:[#allocation2 + $0xe8] sm:$0xff] %vm1460, %v1423
          %1491 = vst.msk [vmem:[#allocation2 + $0xf0] sm:$0xff] %vm1460, %v1425
          %1492 = vst.msk [vmem:[#allocation2 + $0xf8] sm:$0xff] %vm1460, %v1427
          %v1493 = vld [vmem:[%s1299 + $0x1] sm:$0xff]
          %v1494 = vld [vmem:[%s1299 + $0x9] sm:$0xff]
          %v1495 = vld [vmem:[%s1299 + $0x19] sm:$0xff]
          %v1496 = vld [vmem:[%s1299 + $0x21] sm:$0xff]
          %v1497 = vld [vmem:[%s1299 + $0x31] sm:$0xff]
          %v1498 = vld [vmem:[%s1299 + $0x39] sm:$0xff]
          %v1499 = vld [vmem:[%s1299 + $0x49] sm:$0xff]
          %v1500 = vld [vmem:[%s1299 + $0x51] sm:$0xff]
          %v1501 = vld [vmem:[%s1299 + $0x61] sm:$0xff]
          %v1502 = vld [vmem:[%s1299 + $0x69] sm:$0xff]
          %v1503 = vld [vmem:[%s1299 + $0x79] sm:$0xff]
          %v1504 = vld [vmem:[%s1299 + $0x81] sm:$0xff]
          %v1505 = vld [vmem:[%s1299 + $0x91] sm:$0xff]
          %v1506 = vld [vmem:[%s1299 + $0x99] sm:$0xff]
          %v1507 = vld [vmem:[%s1299 + $0xa9] sm:$0xff]
          %v1508 = vld [vmem:[%s1299 + $0xb1] sm:$0xff]
          %v1509 = vld [vmem:[%s1299 + $0xc1] sm:$0xff]
          %v1510 = vld [vmem:[%s1299 + $0xc9] sm:$0xff]
          %v1511 = vld [vmem:[%s1299 + $0xd9] sm:$0xff]
          %v1512 = vld [vmem:[%s1299 + $0xe1] sm:$0xff]
          %v1513 = vld [vmem:[%s1299 + $0xf1] sm:$0xff]
          %v1514 = vld [vmem:[%s1299 + $0xf9] sm:$0xff]
          %v1515 = vld [vmem:[%s1299 + $0x109] sm:$0xff]
          %v1516 = vld [vmem:[%s1299 + $0x111] sm:$0xff]
          %v1517 = vld [vmem:[%s1299 + $0x121] sm:$0xff]
          %v1518 = vld [vmem:[%s1299 + $0x129] sm:$0xff]
          %v1519 = vld [vmem:[%s1299 + $0x139] sm:$0xff]
          %v1520 = vld [vmem:[%s1299 + $0x141] sm:$0xff]
          %v1521 = vld [vmem:[%s1299 + $0x151] sm:$0xff]
          %v1522 = vld [vmem:[%s1299 + $0x159] sm:$0xff]
          %v1523 = vld [vmem:[%s1299 + $0x169] sm:$0xff]
          %v1524 = vld [vmem:[%s1299 + $0x171] sm:$0xff]
          %1557 = vrot.lane.b32.xlu0 %v1493, 28
          %v1558 = vpop.permute.xlu0 %1557
          %1559 = vrot.lane.b32.xlu0 %v1494, 28
          %v1560 = vpop.permute.xlu0 %1559
          %1561 = vrot.lane.b32.xlu0 %v1495, 28
          %v1562 = vpop.permute.xlu0 %1561
          %1563 = vrot.lane.b32.xlu0 %v1496, 28
          %v1564 = vpop.permute.xlu0 %1563
          %1565 = vrot.lane.b32.xlu0 %v1497, 28
          %v1566 = vpop.permute.xlu0 %1565
          %1567 = vrot.lane.b32.xlu0 %v1498, 28
          %v1568 = vpop.permute.xlu0 %1567
          %1569 = vrot.lane.b32.xlu0 %v1499, 28
          %v1570 = vpop.permute.xlu0 %1569
          %1571 = vrot.lane.b32.xlu0 %v1500, 28
          %v1572 = vpop.permute.xlu0 %1571
          %1573 = vrot.lane.b32.xlu0 %v1501, 28
          %v1574 = vpop.permute.xlu0 %1573
          %1575 = vrot.lane.b32.xlu0 %v1502, 28
          %v1576 = vpop.permute.xlu0 %1575
          %1577 = vrot.lane.b32.xlu0 %v1503, 28
          %v1578 = vpop.permute.xlu0 %1577
          %1579 = vrot.lane.b32.xlu0 %v1504, 28
          %v1580 = vpop.permute.xlu0 %1579
          %1581 = vrot.lane.b32.xlu0 %v1505, 28
          %v1582 = vpop.permute.xlu0 %1581
          %1583 = vrot.lane.b32.xlu0 %v1506, 28
          %v1584 = vpop.permute.xlu0 %1583
          %1585 = vrot.lane.b32.xlu0 %v1507, 28
          %v1586 = vpop.permute.xlu0 %1585
          %1587 = vrot.lane.b32.xlu0 %v1508, 28
          %v1588 = vpop.permute.xlu0 %1587
          %1589 = vrot.lane.b32.xlu0 %v1509, 28
          %v1590 = vpop.permute.xlu0 %1589
          %1591 = vrot.lane.b32.xlu0 %v1510, 28
          %v1592 = vpop.permute.xlu0 %1591
          %1593 = vrot.lane.b32.xlu0 %v1511, 28
          %v1594 = vpop.permute.xlu0 %1593
          %1595 = vrot.lane.b32.xlu0 %v1512, 28
          %v1596 = vpop.permute.xlu0 %1595
          %1597 = vrot.lane.b32.xlu0 %v1513, 28
          %v1598 = vpop.permute.xlu0 %1597
          %1599 = vrot.lane.b32.xlu0 %v1514, 28
          %v1600 = vpop.permute.xlu0 %1599
          %1601 = vrot.lane.b32.xlu0 %v1515, 28
          %v1602 = vpop.permute.xlu0 %1601
          %1603 = vrot.lane.b32.xlu0 %v1516, 28
          %v1604 = vpop.permute.xlu0 %1603
          %1605 = vrot.lane.b32.xlu0 %v1517, 28
          %v1606 = vpop.permute.xlu0 %1605
          %1607 = vrot.lane.b32.xlu0 %v1518, 28
          %v1608 = vpop.permute.xlu0 %1607
          %1609 = vrot.lane.b32.xlu0 %v1519, 28
          %v1610 = vpop.permute.xlu0 %1609
          %1611 = vrot.lane.b32.xlu0 %v1520, 28
          %v1612 = vpop.permute.xlu0 %1611
          %1613 = vrot.lane.b32.xlu0 %v1521, 28
          %v1614 = vpop.permute.xlu0 %1613
          %1615 = vrot.lane.b32.xlu0 %v1522, 28
          %v1616 = vpop.permute.xlu0 %1615
          %1617 = vrot.lane.b32.xlu0 %v1523, 28
          %v1618 = vpop.permute.xlu0 %1617
          %1619 = vrot.lane.b32.xlu0 %v1524, 28
          %v1620 = vpop.permute.xlu0 %1619
          %vm1653 = vcmask 261344
          %1654 = vst.msk [vmem:[#allocation2] sm:$0xff] %vm1653, %v1558
          %1655 = vst.msk [vmem:[#allocation2 + $0x8] sm:$0xff] %vm1653, %v1560
          %1656 = vst.msk [vmem:[#allocation2 + $0x10] sm:$0xff] %vm1653, %v1562
          %1657 = vst.msk [vmem:[#allocation2 + $0x18] sm:$0xff] %vm1653, %v1564
          %1658 = vst.msk [vmem:[#allocation2 + $0x20] sm:$0xff] %vm1653, %v1566
          %1659 = vst.msk [vmem:[#allocation2 + $0x28] sm:$0xff] %vm1653, %v1568
          %1660 = vst.msk [vmem:[#allocation2 + $0x30] sm:$0xff] %vm1653, %v1570
          %1661 = vst.msk [vmem:[#allocation2 + $0x38] sm:$0xff] %vm1653, %v1572
          %1662 = vst.msk [vmem:[#allocation2 + $0x40] sm:$0xff] %vm1653, %v1574
          %1663 = vst.msk [vmem:[#allocation2 + $0x48] sm:$0xff] %vm1653, %v1576
          %1664 = vst.msk [vmem:[#allocation2 + $0x50] sm:$0xff] %vm1653, %v1578
          %1665 = vst.msk [vmem:[#allocation2 + $0x58] sm:$0xff] %vm1653, %v1580
          %1666 = vst.msk [vmem:[#allocation2 + $0x60] sm:$0xff] %vm1653, %v1582
          %1667 = vst.msk [vmem:[#allocation2 + $0x68] sm:$0xff] %vm1653, %v1584
          %1668 = vst.msk [vmem:[#allocation2 + $0x70] sm:$0xff] %vm1653, %v1586
          %1669 = vst.msk [vmem:[#allocation2 + $0x78] sm:$0xff] %vm1653, %v1588
          %1670 = vst.msk [vmem:[#allocation2 + $0x80] sm:$0xff] %vm1653, %v1590
          %1671 = vst.msk [vmem:[#allocation2 + $0x88] sm:$0xff] %vm1653, %v1592
          %1672 = vst.msk [vmem:[#allocation2 + $0x90] sm:$0xff] %vm1653, %v1594
          %1673 = vst.msk [vmem:[#allocation2 + $0x98] sm:$0xff] %vm1653, %v1596
          %1674 = vst.msk [vmem:[#allocation2 + $0xa0] sm:$0xff] %vm1653, %v1598
          %1675 = vst.msk [vmem:[#allocation2 + $0xa8] sm:$0xff] %vm1653, %v1600
          %1676 = vst.msk [vmem:[#allocation2 + $0xb0] sm:$0xff] %vm1653, %v1602
          %1677 = vst.msk [vmem:[#allocation2 + $0xb8] sm:$0xff] %vm1653, %v1604
          %1678 = vst.msk [vmem:[#allocation2 + $0xc0] sm:$0xff] %vm1653, %v1606
          %1679 = vst.msk [vmem:[#allocation2 + $0xc8] sm:$0xff] %vm1653, %v1608
          %1680 = vst.msk [vmem:[#allocation2 + $0xd0] sm:$0xff] %vm1653, %v1610
          %1681 = vst.msk [vmem:[#allocation2 + $0xd8] sm:$0xff] %vm1653, %v1612
          %1682 = vst.msk [vmem:[#allocation2 + $0xe0] sm:$0xff] %vm1653, %v1614
          %1683 = vst.msk [vmem:[#allocation2 + $0xe8] sm:$0xff] %vm1653, %v1616
          %1684 = vst.msk [vmem:[#allocation2 + $0xf0] sm:$0xff] %vm1653, %v1618
          %1685 = vst.msk [vmem:[#allocation2 + $0xf8] sm:$0xff] %vm1653, %v1620
          %v1686 = vld [vmem:[%s1299 + $0x2] sm:$0xff]
          %v1687 = vld [vmem:[%s1299 + $0xa] sm:$0xff]
          %v1688 = vld [vmem:[%s1299 + $0x1a] sm:$0xff]
          %v1689 = vld [vmem:[%s1299 + $0x22] sm:$0xff]
          %v1690 = vld [vmem:[%s1299 + $0x32] sm:$0xff]
          %v1691 = vld [vmem:[%s1299 + $0x3a] sm:$0xff]
          %v1692 = vld [vmem:[%s1299 + $0x4a] sm:$0xff]
          %v1693 = vld [vmem:[%s1299 + $0x52] sm:$0xff]
          %v1694 = vld [vmem:[%s1299 + $0x62] sm:$0xff]
          %v1695 = vld [vmem:[%s1299 + $0x6a] sm:$0xff]
          %v1696 = vld [vmem:[%s1299 + $0x7a] sm:$0xff]
          %v1697 = vld [vmem:[%s1299 + $0x82] sm:$0xff]
          %v1698 = vld [vmem:[%s1299 + $0x92] sm:$0xff]
          %v1699 = vld [vmem:[%s1299 + $0x9a] sm:$0xff]
          %v1700 = vld [vmem:[%s1299 + $0xaa] sm:$0xff]
          %v1701 = vld [vmem:[%s1299 + $0xb2] sm:$0xff]
          %v1702 = vld [vmem:[%s1299 + $0xc2] sm:$0xff]
          %v1703 = vld [vmem:[%s1299 + $0xca] sm:$0xff]
          %v1704 = vld [vmem:[%s1299 + $0xda] sm:$0xff]
          %v1705 = vld [vmem:[%s1299 + $0xe2] sm:$0xff]
          %v1706 = vld [vmem:[%s1299 + $0xf2] sm:$0xff]
          %v1707 = vld [vmem:[%s1299 + $0xfa] sm:$0xff]
          %v1708 = vld [vmem:[%s1299 + $0x10a] sm:$0xff]
          %v1709 = vld [vmem:[%s1299 + $0x112] sm:$0xff]
          %v1710 = vld [vmem:[%s1299 + $0x122] sm:$0xff]
          %v1711 = vld [vmem:[%s1299 + $0x12a] sm:$0xff]
          %v1712 = vld [vmem:[%s1299 + $0x13a] sm:$0xff]
          %v1713 = vld [vmem:[%s1299 + $0x142] sm:$0xff]
          %v1714 = vld [vmem:[%s1299 + $0x152] sm:$0xff]
          %v1715 = vld [vmem:[%s1299 + $0x15a] sm:$0xff]
          %v1716 = vld [vmem:[%s1299 + $0x16a] sm:$0xff]
          %v1717 = vld [vmem:[%s1299 + $0x172] sm:$0xff]
          %1750 = vrot.lane.b32.xlu0 %v1686, 32
          %v1751 = vpop.permute.xlu0 %1750
          %1752 = vrot.lane.b32.xlu0 %v1687, 32
          %v1753 = vpop.permute.xlu0 %1752
          %1754 = vrot.lane.b32.xlu0 %v1688, 32
          %v1755 = vpop.permute.xlu0 %1754
          %1756 = vrot.lane.b32.xlu0 %v1689, 32
          %v1757 = vpop.permute.xlu0 %1756
          %1758 = vrot.lane.b32.xlu0 %v1690, 32
          %v1759 = vpop.permute.xlu0 %1758
          %1760 = vrot.lane.b32.xlu0 %v1691, 32
          %v1761 = vpop.permute.xlu0 %1760
          %1762 = vrot.lane.b32.xlu0 %v1692, 32
          %v1763 = vpop.permute.xlu0 %1762
          %1764 = vrot.lane.b32.xlu0 %v1693, 32
          %v1765 = vpop.permute.xlu0 %1764
          %1766 = vrot.lane.b32.xlu0 %v1694, 32
          %v1767 = vpop.permute.xlu0 %1766
          %1768 = vrot.lane.b32.xlu0 %v1695, 32
          %v1769 = vpop.permute.xlu0 %1768
          %1770 = vrot.lane.b32.xlu0 %v1696, 32
          %v1771 = vpop.permute.xlu0 %1770
          %1772 = vrot.lane.b32.xlu0 %v1697, 32
          %v1773 = vpop.permute.xlu0 %1772
          %1774 = vrot.lane.b32.xlu0 %v1698, 32
          %v1775 = vpop.permute.xlu0 %1774
          %1776 = vrot.lane.b32.xlu0 %v1699, 32
          %v1777 = vpop.permute.xlu0 %1776
          %1778 = vrot.lane.b32.xlu0 %v1700, 32
          %v1779 = vpop.permute.xlu0 %1778
          %1780 = vrot.lane.b32.xlu0 %v1701, 32
          %v1781 = vpop.permute.xlu0 %1780
          %1782 = vrot.lane.b32.xlu0 %v1702, 32
          %v1783 = vpop.permute.xlu0 %1782
          %1784 = vrot.lane.b32.xlu0 %v1703, 32
          %v1785 = vpop.permute.xlu0 %1784
          %1786 = vrot.lane.b32.xlu0 %v1704, 32
          %v1787 = vpop.permute.xlu0 %1786
          %1788 = vrot.lane.b32.xlu0 %v1705, 32
          %v1789 = vpop.permute.xlu0 %1788
          %1790 = vrot.lane.b32.xlu0 %v1706, 32
          %v1791 = vpop.permute.xlu0 %1790
          %1792 = vrot.lane.b32.xlu0 %v1707, 32
          %v1793 = vpop.permute.xlu0 %1792
          %1794 = vrot.lane.b32.xlu0 %v1708, 32
          %v1795 = vpop.permute.xlu0 %1794
          %1796 = vrot.lane.b32.xlu0 %v1709, 32
          %v1797 = vpop.permute.xlu0 %1796
          %1798 = vrot.lane.b32.xlu0 %v1710, 32
          %v1799 = vpop.permute.xlu0 %1798
          %1800 = vrot.lane.b32.xlu0 %v1711, 32
          %v1801 = vpop.permute.xlu0 %1800
          %1802 = vrot.lane.b32.xlu0 %v1712, 32
          %v1803 = vpop.permute.xlu0 %1802
          %1804 = vrot.lane.b32.xlu0 %v1713, 32
          %v1805 = vpop.permute.xlu0 %1804
          %1806 = vrot.lane.b32.xlu0 %v1714, 32
          %v1807 = vpop.permute.xlu0 %1806
          %1808 = vrot.lane.b32.xlu0 %v1715, 32
          %v1809 = vpop.permute.xlu0 %1808
          %1810 = vrot.lane.b32.xlu0 %v1716, 32
          %v1811 = vpop.permute.xlu0 %1810
          %1812 = vrot.lane.b32.xlu0 %v1717, 32
          %v1813 = vpop.permute.xlu0 %1812
          %vm1846 = vcmask 294144
          %1847 = vst.msk [vmem:[#allocation2] sm:$0xff] %vm1846, %v1751
          %1848 = vst.msk [vmem:[#allocation2 + $0x8] sm:$0xff] %vm1846, %v1753
          %1849 = vst.msk [vmem:[#allocation2 + $0x10] sm:$0xff] %vm1846, %v1755
          %1850 = vst.msk [vmem:[#allocation2 + $0x18] sm:$0xff] %vm1846, %v1757
          %1851 = vst.msk [vmem:[#allocation2 + $0x20] sm:$0xff] %vm1846, %v1759
          %1852 = vst.msk [vmem:[#allocation2 + $0x28] sm:$0xff] %vm1846, %v1761
          %1853 = vst.msk [vmem:[#allocation2 + $0x30] sm:$0xff] %vm1846, %v1763
          %1854 = vst.msk [vmem:[#allocation2 + $0x38] sm:$0xff] %vm1846, %v1765
          %1855 = vst.msk [vmem:[#allocation2 + $0x40] sm:$0xff] %vm1846, %v1767
          %1856 = vst.msk [vmem:[#allocation2 + $0x48] sm:$0xff] %vm1846, %v1769
          %1857 = vst.msk [vmem:[#allocation2 + $0x50] sm:$0xff] %vm1846, %v1771
          %1858 = vst.msk [vmem:[#allocation2 + $0x58] sm:$0xff] %vm1846, %v1773
          %1859 = vst.msk [vmem:[#allocation2 + $0x60] sm:$0xff] %vm1846, %v1775
          %1860 = vst.msk [vmem:[#allocation2 + $0x68] sm:$0xff] %vm1846, %v1777
          %1861 = vst.msk [vmem:[#allocation2 + $0x70] sm:$0xff] %vm1846, %v1779
          %1862 = vst.msk [vmem:[#allocation2 + $0x78] sm:$0xff] %vm1846, %v1781
          %1863 = vst.msk [vmem:[#allocation2 + $0x80] sm:$0xff] %vm1846, %v1783
          %1864 = vst.msk [vmem:[#allocation2 + $0x88] sm:$0xff] %vm1846, %v1785
          %1865 = vst.msk [vmem:[#allocation2 + $0x90] sm:$0xff] %vm1846, %v1787
          %1866 = vst.msk [vmem:[#allocation2 + $0x98] sm:$0xff] %vm1846, %v1789
          %1867 = vst.msk [vmem:[#allocation2 + $0xa0] sm:$0xff] %vm1846, %v1791
          %1868 = vst.msk [vmem:[#allocation2 + $0xa8] sm:$0xff] %vm1846, %v1793
          %1869 = vst.msk [vmem:[#allocation2 + $0xb0] sm:$0xff] %vm1846, %v1795
          %1870 = vst.msk [vmem:[#allocation2 + $0xb8] sm:$0xff] %vm1846, %v1797
          %1871 = vst.msk [vmem:[#allocation2 + $0xc0] sm:$0xff] %vm1846, %v1799
          %1872 = vst.msk [vmem:[#allocation2 + $0xc8] sm:$0xff] %vm1846, %v1801
          %1873 = vst.msk [vmem:[#allocation2 + $0xd0] sm:$0xff] %vm1846, %v1803
          %1874 = vst.msk [vmem:[#allocation2 + $0xd8] sm:$0xff] %vm1846, %v1805
          %1875 = vst.msk [vmem:[#allocation2 + $0xe0] sm:$0xff] %vm1846, %v1807
          %1876 = vst.msk [vmem:[#allocation2 + $0xe8] sm:$0xff] %vm1846, %v1809
          %1877 = vst.msk [vmem:[#allocation2 + $0xf0] sm:$0xff] %vm1846, %v1811
          %1878 = vst.msk [vmem:[#allocation2 + $0xf8] sm:$0xff] %vm1846, %v1813
        $region36: #{tpu_custom_call.1} parent=31 // pred_fallthru
          _
        %v1879 = vld [vmem:[#allocation2] sm:$0xff]
        %v1880 = vld [vmem:[#allocation2 + $0x8] sm:$0xff]
        %v1881 = vld [vmem:[#allocation2 + $0x10] sm:$0xff]
        %v1882 = vld [vmem:[#allocation2 + $0x18] sm:$0xff]
        %v1883 = vld [vmem:[#allocation2 + $0x20] sm:$0xff]
        %v1884 = vld [vmem:[#allocation2 + $0x28] sm:$0xff]
        %v1885 = vld [vmem:[#allocation2 + $0x30] sm:$0xff]
        %v1886 = vld [vmem:[#allocation2 + $0x38] sm:$0xff]
        %v1887 = vld [vmem:[#allocation2 + $0x40] sm:$0xff]
        %v1888 = vld [vmem:[#allocation2 + $0x48] sm:$0xff]
        %v1889 = vld [vmem:[#allocation2 + $0x50] sm:$0xff]
        %v1890 = vld [vmem:[#allocation2 + $0x58] sm:$0xff]
        %v1891 = vld [vmem:[#allocation2 + $0x60] sm:$0xff]
        %v1892 = vld [vmem:[#allocation2 + $0x68] sm:$0xff]
        %v1893 = vld [vmem:[#allocation2 + $0x70] sm:$0xff]
        %v1894 = vld [vmem:[#allocation2 + $0x78] sm:$0xff]
        %v1895 = vld [vmem:[#allocation2 + $0x80] sm:$0xff]
        %v1896 = vld [vmem:[#allocation2 + $0x88] sm:$0xff]
        %v1897 = vld [vmem:[#allocation2 + $0x90] sm:$0xff]
        %v1898 = vld [vmem:[#allocation2 + $0x98] sm:$0xff]
        %v1899 = vld [vmem:[#allocation2 + $0xa0] sm:$0xff]
        %v1900 = vld [vmem:[#allocation2 + $0xa8] sm:$0xff]
        %v1901 = vld [vmem:[#allocation2 + $0xb0] sm:$0xff]
        %v1902 = vld [vmem:[#allocation2 + $0xb8] sm:$0xff]
        %v1903 = vld [vmem:[#allocation2 + $0xc0] sm:$0xff]
        %v1904 = vld [vmem:[#allocation2 + $0xc8] sm:$0xff]
        %v1905 = vld [vmem:[#allocation2 + $0xd0] sm:$0xff]
        %v1906 = vld [vmem:[#allocation2 + $0xd8] sm:$0xff]
        %v1907 = vld [vmem:[#allocation2 + $0xe0] sm:$0xff]
        %v1908 = vld [vmem:[#allocation2 + $0xe8] sm:$0xff]
        %v1909 = vld [vmem:[#allocation2 + $0xf0] sm:$0xff]
        %v1910 = vld [vmem:[#allocation2 + $0xf8] sm:$0xff]
        %v1911 = vld [vmem:[%s219] sm:$0xff]
        %v1912 = vld [vmem:[%s219 + $0x8] sm:$0xff]
        %v1913 = vld [vmem:[%s219 + $0x10] sm:$0xff]
        %v1914 = vld [vmem:[%s219 + $0x18] sm:$0xff]
        %v1915 = vld [vmem:[%s219 + $0x20] sm:$0xff]
        %v1916 = vld [vmem:[%s219 + $0x28] sm:$0xff]
        %v1917 = vld [vmem:[%s219 + $0x30] sm:$0xff]
        %v1918 = vld [vmem:[%s219 + $0x38] sm:$0xff]
        %v1919 = vld [vmem:[%s219 + $0x40] sm:$0xff]
        %v1920 = vld [vmem:[%s219 + $0x48] sm:$0xff]
        %v1921 = vld [vmem:[%s219 + $0x50] sm:$0xff]
        %v1922 = vld [vmem:[%s219 + $0x58] sm:$0xff]
        %v1923 = vld [vmem:[%s219 + $0x60] sm:$0xff]
        %v1924 = vld [vmem:[%s219 + $0x68] sm:$0xff]
        %v1925 = vld [vmem:[%s219 + $0x70] sm:$0xff]
        %v1926 = vld [vmem:[%s219 + $0x78] sm:$0xff]
        %v1927 = vld [vmem:[%s222] sm:$0x1]
        %v1929 = vlaneseq
        %v1930 = vshrl.u32 %v1929, 7
        %v1931 = vsub.s32 0, %v1930
        %v1932 = vrot.slane %v1927, %v1931
        %1934 = vmatprep.subr.mxu0 0.0
        %1935 = vmatpush1.msra.mxu0 %v1911
        %1936 = vmatprep.subr.mxu0 0.0
        %1937 = vmatpush1.msra.mxu0 %v1912
        %1938 = vmatprep.subr.mxu0 0.0
        %1939 = vmatpush1.msra.mxu0 %v1913
        %1940 = vmatprep.subr.mxu0 0.0
        %1941 = vmatpush1.msra.mxu0 %v1914
        %1942 = vmatprep.subr.mxu0 0.0
        %1943 = vmatpush1.msra.mxu0 %v1915
        %1944 = vmatprep.subr.mxu0 0.0
        %1945 = vmatpush1.msra.mxu0 %v1916
        %1946 = vmatprep.subr.mxu0 0.0
        %1947 = vmatpush1.msra.mxu0 %v1917
        %1948 = vmatprep.subr.mxu0 0.0
        %1949 = vmatpush1.msra.mxu0 %v1918
        %1950 = vmatprep.subr.mxu0 0.0
        %1951 = vmatpush1.msra.mxu0 %v1919
        %1952 = vmatprep.subr.mxu0 0.0
        %1953 = vmatpush1.msra.mxu0 %v1920
        %1954 = vmatprep.subr.mxu0 0.0
        %1955 = vmatpush1.msra.mxu0 %v1921
        %1956 = vmatprep.subr.mxu0 0.0
        %1957 = vmatpush1.msra.mxu0 %v1922
        %1958 = vmatprep.subr.mxu0 0.0
        %1959 = vmatpush1.msra.mxu0 %v1923
        %1960 = vmatprep.subr.mxu0 0.0
        %1961 = vmatpush1.msra.mxu0 %v1924
        %1962 = vmatprep.subr.mxu0 0.0
        %1963 = vmatpush1.msra.mxu0 %v1925
        %1964 = vmatprep.subr.mxu0 0.0
        %1965 = vmatpush1.msra.mxu0 %v1926
        %1966 = vmatprep.subr.mxu0 0.0
        %1967 = vmatpush1.msra.mxu0 0.0
        %1968 = vmatprep.subr.mxu0 0.0
        %1969 = vmatpush1.msra.mxu0 0.0
        %1970 = vmatprep.subr.mxu0 0.0
        %1971 = vmatpush1.msra.mxu0 0.0
        %1972 = vmatprep.subr.mxu0 0.0
        %1973 = vmatpush1.msra.mxu0 0.0
        %1974 = vmatprep.subr.mxu0 0.0
        %1975 = vmatpush1.msra.mxu0 0.0
        %1976 = vmatprep.subr.mxu0 0.0
        %1977 = vmatpush1.msra.mxu0 0.0
        %1978 = vmatprep.subr.mxu0 0.0
        %1979 = vmatpush1.msra.mxu0 0.0
        %1980 = vmatprep.subr.mxu0 0.0
        %1981 = vmatpush1.msra.mxu0 0.0
        %1982 = vmatprep.subr.mxu0 0.0
        %1983 = vmatpush1.msra.mxu0 0.0
        %1984 = vmatprep.subr.mxu0 0.0
        %1985 = vmatpush1.msra.mxu0 0.0
        %1986 = vmatprep.subr.mxu0 0.0
        %1987 = vmatpush1.msra.mxu0 0.0
        %1988 = vmatprep.subr.mxu0 0.0
        %1989 = vmatpush1.msra.mxu0 0.0
        %1990 = vmatprep.subr.mxu0 0.0
        %1991 = vmatpush1.msra.mxu0 0.0
        %1992 = vmatprep.subr.mxu0 0.0
        %1993 = vmatpush1.msra.mxu0 0.0
        %1994 = vmatprep.subr.mxu0 0.0
        %1995 = vmatpush1.msra.mxu0 0.0
        %1996 = vmatprep.subr.mxu0 0.0
        %1997 = vmatpush1.msra.mxu0 0.0
        %1998 = vmatprep.mubr.f32.mxu0 0.0
        %1999 = vmatmul.mubr.f32.gmra.mrb[0].mxu0 %v1879
        %v2000 = vpop.f32.mrb[0].mxu0
        %v2001 = vadd.f32 %v1932, %v2000
        %v2002 = vpop.f32.mrb[0].mxu0
        %2003 = vmatprep.mubr.f32.mxu0 0.0
        %2004 = vmatmul.mubr.f32.gmra.mrb[0].mxu0 %v1880
        %v2005 = vpop.f32.mrb[0].mxu0
        %v2006 = vadd.f32 %v1932, %v2005
        %v2007 = vpop.f32.mrb[0].mxu0
        %2008 = vmatprep.mubr.f32.mxu0 0.0
        %2009 = vmatmul.mubr.f32.gmra.mrb[0].mxu0 %v1881
        %v2010 = vpop.f32.mrb[0].mxu0
        %v2011 = vadd.f32 %v1932, %v2010
        %v2012 = vpop.f32.mrb[0].mxu0
        %2013 = vmatprep.mubr.f32.mxu0 0.0
        %2014 = vmatmul.mubr.f32.gmra.mrb[0].mxu0 %v1882
        %v2015 = vpop.f32.mrb[0].mxu0
        %v2016 = vadd.f32 %v1932, %v2015
        %v2017 = vpop.f32.mrb[0].mxu0
        %2018 = vmatprep.mubr.f32.mxu0 0.0
        %2019 = vmatmul.mubr.f32.gmra.mrb[0].mxu0 %v1883
        %v2020 = vpop.f32.mrb[0].mxu0
        %v2021 = vadd.f32 %v1932, %v2020
        %v2022 = vpop.f32.mrb[0].mxu0
        %2023 = vmatprep.mubr.f32.mxu0 0.0
        %2024 = vmatmul.mubr.f32.gmra.mrb[0].mxu0 %v1884
        %v2025 = vpop.f32.mrb[0].mxu0
        %v2026 = vadd.f32 %v1932, %v2025
        %v2027 = vpop.f32.mrb[0].mxu0
        %2028 = vmatprep.mubr.f32.mxu0 0.0
        %2029 = vmatmul.mubr.f32.gmra.mrb[0].mxu0 %v1885
        %v2030 = vpop.f32.mrb[0].mxu0
        %v2031 = vadd.f32 %v1932, %v2030
        %v2032 = vpop.f32.mrb[0].mxu0
        %2033 = vmatprep.mubr.f32.mxu0 0.0
        %2034 = vmatmul.mubr.f32.gmra.mrb[0].mxu0 %v1886
        %v2035 = vpop.f32.mrb[0].mxu0
        %v2036 = vadd.f32 %v1932, %v2035
        %v2037 = vpop.f32.mrb[0].mxu0
        %2038 = vmatprep.mubr.f32.mxu0 0.0
        %2039 = vmatmul.mubr.f32.gmra.mrb[0].mxu0 %v1887
        %v2040 = vpop.f32.mrb[0].mxu0
        %v2041 = vadd.f32 %v1932, %v2040
        %v2042 = vpop.f32.mrb[0].mxu0
        %2043 = vmatprep.mubr.f32.mxu0 0.0
        %2044 = vmatmul.mubr.f32.gmra.mrb[0].mxu0 %v1888
        %v2045 = vpop.f32.mrb[0].mxu0
        %v2046 = vadd.f32 %v1932, %v2045
        %v2047 = vpop.f32.mrb[0].mxu0
        %2048 = vmatprep.mubr.f32.mxu0 0.0
        %2049 = vmatmul.mubr.f32.gmra.mrb[0].mxu0 %v1889
        %v2050 = vpop.f32.mrb[0].mxu0
        %v2051 = vadd.f32 %v1932, %v2050
        %v2052 = vpop.f32.mrb[0].mxu0
        %2053 = vmatprep.mubr.f32.mxu0 0.0
        %2054 = vmatmul.mubr.f32.gmra.mrb[0].mxu0 %v1890
        %v2055 = vpop.f32.mrb[0].mxu0
        %v2056 = vadd.f32 %v1932, %v2055
        %v2057 = vpop.f32.mrb[0].mxu0
        %2058 = vmatprep.mubr.f32.mxu0 0.0
        %2059 = vmatmul.mubr.f32.gmra.mrb[0].mxu0 %v1891
        %v2060 = vpop.f32.mrb[0].mxu0
        %v2061 = vadd.f32 %v1932, %v2060
        %v2062 = vpop.f32.mrb[0].mxu0
        %2063 = vmatprep.mubr.f32.mxu0 0.0
        %2064 = vmatmul.mubr.f32.gmra.mrb[0].mxu0 %v1892
        %v2065 = vpop.f32.mrb[0].mxu0
        %v2066 = vadd.f32 %v1932, %v2065
        %v2067 = vpop.f32.mrb[0].mxu0
        %2068 = vmatprep.mubr.f32.mxu0 0.0
        %2069 = vmatmul.mubr.f32.gmra.mrb[0].mxu0 %v1893
        %v2070 = vpop.f32.mrb[0].mxu0
        %v2071 = vadd.f32 %v1932, %v2070
        %v2072 = vpop.f32.mrb[0].mxu0
        %2073 = vmatprep.mubr.f32.mxu0 0.0
        %2074 = vmatmul.mubr.f32.gmra.mrb[0].mxu0 %v1894
        %v2075 = vpop.f32.mrb[0].mxu0
        %v2076 = vadd.f32 %v1932, %v2075
        %v2077 = vpop.f32.mrb[0].mxu0
        %2078 = vmatprep.mubr.f32.mxu0 0.0
        %2079 = vmatmul.mubr.f32.gmra.mrb[0].mxu0 %v1895
        %v2080 = vpop.f32.mrb[0].mxu0
        %v2081 = vadd.f32 %v1932, %v2080
        %v2082 = vpop.f32.mrb[0].mxu0
        %2083 = vmatprep.mubr.f32.mxu0 0.0
        %2084 = vmatmul.mubr.f32.gmra.mrb[0].mxu0 %v1896
        %v2085 = vpop.f32.mrb[0].mxu0
        %v2086 = vadd.f32 %v1932, %v2085
        %v2087 = vpop.f32.mrb[0].mxu0
        %2088 = vmatprep.mubr.f32.mxu0 0.0
        %2089 = vmatmul.mubr.f32.gmra.mrb[0].mxu0 %v1897
        %v2090 = vpop.f32.mrb[0].mxu0
        %v2091 = vadd.f32 %v1932, %v2090
        %v2092 = vpop.f32.mrb[0].mxu0
        %2093 = vmatprep.mubr.f32.mxu0 0.0
        %2094 = vmatmul.mubr.f32.gmra.mrb[0].mxu0 %v1898
        %v2095 = vpop.f32.mrb[0].mxu0
        %v2096 = vadd.f32 %v1932, %v2095
        %v2097 = vpop.f32.mrb[0].mxu0
        %2098 = vmatprep.mubr.f32.mxu0 0.0
        %2099 = vmatmul.mubr.f32.gmra.mrb[0].mxu0 %v1899
        %v2100 = vpop.f32.mrb[0].mxu0
        %v2101 = vadd.f32 %v1932, %v2100
        %v2102 = vpop.f32.mrb[0].mxu0
        %2103 = vmatprep.mubr.f32.mxu0 0.0
        %2104 = vmatmul.mubr.f32.gmra.mrb[0].mxu0 %v1900
        %v2105 = vpop.f32.mrb[0].mxu0
        %v2106 = vadd.f32 %v1932, %v2105
        %v2107 = vpop.f32.mrb[0].mxu0
        %2108 = vmatprep.mubr.f32.mxu0 0.0
        %2109 = vmatmul.mubr.f32.gmra.mrb[0].mxu0 %v1901
        %v2110 = vpop.f32.mrb[0].mxu0
        %v2111 = vadd.f32 %v1932, %v2110
        %v2112 = vpop.f32.mrb[0].mxu0
        %2113 = vmatprep.mubr.f32.mxu0 0.0
        %2114 = vmatmul.mubr.f32.gmra.mrb[0].mxu0 %v1902
        %v2115 = vpop.f32.mrb[0].mxu0
        %v2116 = vadd.f32 %v1932, %v2115
        %v2117 = vpop.f32.mrb[0].mxu0
        %2118 = vmatprep.mubr.f32.mxu0 0.0
        %2119 = vmatmul.mubr.f32.gmra.mrb[0].mxu0 %v1903
        %v2120 = vpop.f32.mrb[0].mxu0
        %v2121 = vadd.f32 %v1932, %v2120
        %v2122 = vpop.f32.mrb[0].mxu0
        %2123 = vmatprep.mubr.f32.mxu0 0.0
        %2124 = vmatmul.mubr.f32.gmra.mrb[0].mxu0 %v1904
        %v2125 = vpop.f32.mrb[0].mxu0
        %v2126 = vadd.f32 %v1932, %v2125
        %v2127 = vpop.f32.mrb[0].mxu0
        %2128 = vmatprep.mubr.f32.mxu0 0.0
        %2129 = vmatmul.mubr.f32.gmra.mrb[0].mxu0 %v1905
        %v2130 = vpop.f32.mrb[0].mxu0
        %v2131 = vadd.f32 %v1932, %v2130
        %v2132 = vpop.f32.mrb[0].mxu0
        %2133 = vmatprep.mubr.f32.mxu0 0.0
        %2134 = vmatmul.mubr.f32.gmra.mrb[0].mxu0 %v1906
        %v2135 = vpop.f32.mrb[0].mxu0
        %v2136 = vadd.f32 %v1932, %v2135
        %v2137 = vpop.f32.mrb[0].mxu0
        %2138 = vmatprep.mubr.f32.mxu0 0.0
        %2139 = vmatmul.mubr.f32.gmra.mrb[0].mxu0 %v1907
        %v2140 = vpop.f32.mrb[0].mxu0
        %v2141 = vadd.f32 %v1932, %v2140
        %v2142 = vpop.f32.mrb[0].mxu0
        %2143 = vmatprep.mubr.f32.mxu0 0.0
        %2144 = vmatmul.mubr.f32.gmra.mrb[0].mxu0 %v1908
        %v2145 = vpop.f32.mrb[0].mxu0
        %v2146 = vadd.f32 %v1932, %v2145
        %v2147 = vpop.f32.mrb[0].mxu0
        %2148 = vmatprep.mubr.f32.mxu0 0.0
        %2149 = vmatmul.mubr.f32.gmra.mrb[0].mxu0 %v1909
        %v2150 = vpop.f32.mrb[0].mxu0
        %v2151 = vadd.f32 %v1932, %v2150
        %v2152 = vpop.f32.mrb[0].mxu0
        %2153 = vmatprep.mubr.f32.mxu0 0.0
        %2154 = vmatmul.mubr.f32.gmra.mrb[0].mxu0 %v1910
        %v2155 = vpop.f32.mrb[0].mxu0
        %v2156 = vadd.f32 %v1932, %v2155
        %v2157 = vpop.f32.mrb[0].mxu0
        %2158 = vdwg.mxu0
        %v2159 = vmax.f32 %v2001, 0.0
        %v2160 = vmax.f32 %v2006, 0.0
        %v2161 = vmax.f32 %v2011, 0.0
        %v2162 = vmax.f32 %v2016, 0.0
        %v2163 = vmax.f32 %v2021, 0.0
        %v2164 = vmax.f32 %v2026, 0.0
        %v2165 = vmax.f32 %v2031, 0.0
        %v2166 = vmax.f32 %v2036, 0.0
        %v2167 = vmax.f32 %v2041, 0.0
        %v2168 = vmax.f32 %v2046, 0.0
        %v2169 = vmax.f32 %v2051, 0.0
        %v2170 = vmax.f32 %v2056, 0.0
        %v2171 = vmax.f32 %v2061, 0.0
        %v2172 = vmax.f32 %v2066, 0.0
        %v2173 = vmax.f32 %v2071, 0.0
        %v2174 = vmax.f32 %v2076, 0.0
        %v2175 = vmax.f32 %v2081, 0.0
        %v2176 = vmax.f32 %v2086, 0.0
        %v2177 = vmax.f32 %v2091, 0.0
        %v2178 = vmax.f32 %v2096, 0.0
        %v2179 = vmax.f32 %v2101, 0.0
        %v2180 = vmax.f32 %v2106, 0.0
        %v2181 = vmax.f32 %v2111, 0.0
        %v2182 = vmax.f32 %v2116, 0.0
        %v2183 = vmax.f32 %v2121, 0.0
        %v2184 = vmax.f32 %v2126, 0.0
        %v2185 = vmax.f32 %v2131, 0.0
        %v2186 = vmax.f32 %v2136, 0.0
        %v2187 = vmax.f32 %v2141, 0.0
        %v2188 = vmax.f32 %v2146, 0.0
        %v2189 = vmax.f32 %v2151, 0.0
        %v2190 = vmax.f32 %v2156, 0.0
        %2191 = vst [vmem:[%s210] sm:$0xff] %v2159
        %2192 = vst [vmem:[%s210 + $0x8] sm:$0xff] %v2160
        %2193 = vst [vmem:[%s210 + $0x10] sm:$0xff] %v2161
        %2194 = vst [vmem:[%s210 + $0x18] sm:$0xff] %v2162
        %2195 = vst [vmem:[%s210 + $0x20] sm:$0xff] %v2163
        %2196 = vst [vmem:[%s210 + $0x28] sm:$0xff] %v2164
        %2197 = vst [vmem:[%s210 + $0x30] sm:$0xff] %v2165
        %2198 = vst [vmem:[%s210 + $0x38] sm:$0xff] %v2166
        %2199 = vst [vmem:[%s210 + $0x40] sm:$0xff] %v2167
        %2200 = vst [vmem:[%s210 + $0x48] sm:$0xff] %v2168
        %2201 = vst [vmem:[%s210 + $0x50] sm:$0xff] %v2169
        %2202 = vst [vmem:[%s210 + $0x58] sm:$0xff] %v2170
        %2203 = vst [vmem:[%s210 + $0x60] sm:$0xff] %v2171
        %2204 = vst [vmem:[%s210 + $0x68] sm:$0xff] %v2172
        %2205 = vst [vmem:[%s210 + $0x70] sm:$0xff] %v2173
        %2206 = vst [vmem:[%s210 + $0x78] sm:$0xff] %v2174
        %2207 = vst [vmem:[%s210 + $0x80] sm:$0xff] %v2175
        %2208 = vst [vmem:[%s210 + $0x88] sm:$0xff] %v2176
        %2209 = vst [vmem:[%s210 + $0x90] sm:$0xff] %v2177
        %2210 = vst [vmem:[%s210 + $0x98] sm:$0xff] %v2178
        %2211 = vst [vmem:[%s210 + $0xa0] sm:$0xff] %v2179
        %2212 = vst [vmem:[%s210 + $0xa8] sm:$0xff] %v2180
        %2213 = vst [vmem:[%s210 + $0xb0] sm:$0xff] %v2181
        %2214 = vst [vmem:[%s210 + $0xb8] sm:$0xff] %v2182
        %2215 = vst [vmem:[%s210 + $0xc0] sm:$0xff] %v2183
        %2216 = vst [vmem:[%s210 + $0xc8] sm:$0xff] %v2184
        %2217 = vst [vmem:[%s210 + $0xd0] sm:$0xff] %v2185
        %2218 = vst [vmem:[%s210 + $0xd8] sm:$0xff] %v2186
        %2219 = vst [vmem:[%s210 + $0xe0] sm:$0xff] %v2187
        %2220 = vst [vmem:[%s210 + $0xe8] sm:$0xff] %v2188
        %2221 = vst [vmem:[%s210 + $0xf0] sm:$0xff] %v2189
        %2222 = vst [vmem:[%s210 + $0xf8] sm:$0xff] %v2190
        %s2223 = sand.u32 %s126, 1
        %s2224 = scalar_lea.sflag [#allocation4], %s2223
        %s2225 = sand.u32 %s126, 1
        %s2226 = smul.addr %s2225, 256
        %s2227 = scalar_lea.vmem [#allocation3], %s2226
        // Predicated region
        $region37: #{tpu_custom_call.1} parent=31 // pred_check
          %p2228 = pneg %p136
        $region38: #{tpu_custom_call.1} parent=31 // pred_check_branch
          %2230 = sbr.rel (%p2228) target = $region40
        $region39: #{tpu_custom_call.1} parent=31 // pred_region
          %s2231 = smul.u32 32, %s23
          %s2233 = ssub.s32 4096, 4096
          %2234 = vsyncadd %s2224, %s2233
          %s2235 = sadd.s32 %s24, %s2231
          %s2236 = smul.addr %s22, 32
          %s2237 = sadd.s32 %s2235, %s2236
          %s2238 = smul.addr %s2237, 128
          %s2239 = scalar_lea.hbm %s3, %s2238
          %s2240 = sshll.u32 %s2227, 4
          %s2241 = int_to_ptr.vmem [resolvable:$true] %s2240
          %2246 = dma.vmem_to_hbm [thread:$0]  %s2241, 4096, %s2239, %s2224, 128, 128, 8
        $region40: #{tpu_custom_call.1} parent=31 // pred_fallthru
          _
      $region32: #{tpu_custom_call.1} parent=5 // pred_fallthru
        _
      %p2247 = scmp.le.s32.totalorder 2, %s12
      // Predicated region
      $region41: #{tpu_custom_call.1} parent=5 // pred_check
        %p2248 = pneg %p2247
      $region42: #{tpu_custom_call.1} parent=5 // pred_check_branch
        %2250 = sbr.rel (%p2248) target = $region44
      $region43: #{tpu_custom_call.1} parent=5 // pred_region
        %s2251 = ssub.s32 %s12, 2
        // Predicated region
        $region45: #{tpu_custom_call.1} parent=43 // pred_check
          %p2252 = pneg %p142
        $region46: #{tpu_custom_call.1} parent=43 // pred_check_branch
          %2254 = sbr.rel (%p2252) target = $region48
        $region47: #{tpu_custom_call.1} parent=43 // pred_region
          %s2255 = sand.u32 %s127, 1
          %s2256 = scalar_lea.sflag [#allocation4], %s2255
          %s2257 = sand.u32 %s127, 1
          %s2258 = smul.addr %s2257, 256
          %s2259 = scalar_lea.vmem [#allocation3], %s2258
          %2260 = dma.done %s2256, 4096
        $region48: #{tpu_custom_call.1} parent=43 // pred_fallthru
          _
      $region44: #{tpu_custom_call.1} parent=5 // pred_fallthru
        _
    $region6: #{tpu_custom_call.1} parent=1 // loop_footer
      %s16 = sadd.s32 1, %s12
    $region7: #{tpu_custom_call.1} parent=1 // loop_footer_branch
      %11 = sbr.rel target = $region3
    $region8: #{tpu_custom_call.1} parent=1 // loop_exit
      _
    %2261 = vsyncpa [#allocation4], 1
    %s2262 = scalar_lea.sflag [#allocation4], 1
    %2263 = vsyncpa %s2262, 1

</llo_original>
